<compile_context>
chip_gen: v7x
topology: tpu7x:2x2x1
jax: 0.10.0
libtpu: 0.0.40
codegen_flags: <defaults>
</compile_context>

<pallas_src>
import functools

import jax
import jax.numpy as jnp
from jax.experimental import pallas as pl
from jax.experimental.pallas import tpu as pltpu

IN_DIM = 64 * 12 + 6          # 774
HID = 200
OUT_DIM = 1

IN_PAD = 896                  # 7 * 128
HID_PAD = 256                 # 2 * 128
OUT_PAD = 128                 # 1 * 128

MIN_ROWS_PER_STEP = 128       # split into >=2 grid steps once each step gets >=128 rows


def _round_up(x, m):
    return -(-x // m) * m


def _pad2(a, rows, cols):
    return jnp.pad(a, ((0, rows - a.shape[0]), (0, cols - a.shape[1])))


def mlp_kernel(x_ref,
               w1_ref, b1_ref,
               w2_ref, b2_ref,
               w3_ref, b3_ref,
               w4_ref, b4_ref,
               w5_ref, b5_ref,
               o_ref):
    # Compute dtype (bf16 default / f32) is carried by the weight refs; MXU
    # accumulation, bias-add and ReLU are always f32 (v5e VPU has no bf16 math).
    cdt = w1_ref.dtype
    # Layer 1: (tile, IN_PAD) @ (IN_PAD, HID_PAD) + b -> relu
    h = jnp.dot(x_ref[...], w1_ref[...], preferred_element_type=jnp.float32)
    h = jnp.maximum(h + b1_ref[...], 0.0)
    # Layer 2
    h = jnp.dot(h.astype(cdt), w2_ref[...], preferred_element_type=jnp.float32)
    h = jnp.maximum(h + b2_ref[...], 0.0)
    # Layer 3
    h = jnp.dot(h.astype(cdt), w3_ref[...], preferred_element_type=jnp.float32)
    h = jnp.maximum(h + b3_ref[...], 0.0)
    # Layer 4
    h = jnp.dot(h.astype(cdt), w4_ref[...], preferred_element_type=jnp.float32)
    h = jnp.maximum(h + b4_ref[...], 0.0)
    # Layer 5 (no activation)
    o = jnp.dot(h.astype(cdt), w5_ref[...], preferred_element_type=jnp.float32)
    o_ref[...] = o + b5_ref[...]


def init_params(key):
    """Deterministic parameter init mimicking nn.Linear's U(-1/sqrt(fan_in), +)."""
    dims = [(IN_DIM, HID), (HID, HID), (HID, HID), (HID, HID), (HID, OUT_DIM)]
    params = []
    for i, (fan_in, fan_out) in enumerate(dims):
        kw, kb = jax.random.split(jax.random.fold_in(key, i))
        bound = 1.0 / jnp.sqrt(float(fan_in))
        w = jax.random.uniform(kw, (fan_in, fan_out), jnp.float32, -bound, bound)
        b = jax.random.uniform(kb, (1, fan_out), jnp.float32, -bound, bound)
        params.append((w, b))
    return params


def prepare_params(params, use_bf16=True):
    """One-time padding (and bf16 cast by default) of the weights/biases.

    Done outside the jitted forward so repeated calls do not re-pad or
    re-materialize the padded tensors. Biases stay f32 (added post-matmul).
    """
    wdt = jnp.bfloat16 if use_bf16 else jnp.float32
    (w1, b1), (w2, b2), (w3, b3), (w4, b4), (w5, b5) = params
    return (
        _pad2(w1, IN_PAD, HID_PAD).astype(wdt), _pad2(b1, 1, HID_PAD).astype(jnp.float32),
        _pad2(w2, HID_PAD, HID_PAD).astype(wdt), _pad2(b2, 1, HID_PAD).astype(jnp.float32),
        _pad2(w3, HID_PAD, HID_PAD).astype(wdt), _pad2(b3, 1, HID_PAD).astype(jnp.float32),
        _pad2(w4, HID_PAD, HID_PAD).astype(wdt), _pad2(b4, 1, HID_PAD).astype(jnp.float32),
        _pad2(w5, HID_PAD, OUT_PAD).astype(wdt), _pad2(b5, 1, OUT_PAD).astype(jnp.float32),
    )


@functools.partial(jax.jit, static_argnames=("batch_tile",))
def net_forward(x, padded_params, batch_tile=512):
    """x: (B, 774) -> (B, 1) float32. `padded_params` from prepare_params()."""
    (w1p, b1p, w2p, b2p, w3p, b3p, w4p, b4p, w5p, b5p) = padded_params
    cdt = w1p.dtype

    # Sub-32-bit dtypes pack along sublanes: bf16 batch blocks need 16-row
    # granularity, f32 needs 8.
    sub = 16 if cdt == jnp.bfloat16 else 8
    tile_cap = _round_up(max(batch_tile, sub), sub)

    B = x.shape[0]
    B_sub = _round_up(B, sub)

    if B_sub >= 2 * MIN_ROWS_PER_STEP:
        # Always give the grid >=2 steps once there is enough work: feeds both
        # TensorCores on v7x via dimension_semantics=("parallel",); costs one
        # extra ~0.35us step on single-TC v5e/v6e (negligible).
        n_steps = max(2, -(-B_sub // tile_cap))
        tile = _round_up(-(-B_sub // n_steps), sub)
        B_pad = n_steps * tile
    else:
        tile = B_sub                          # small batch: single grid step
        B_pad = B_sub

    # Cast to compute dtype BEFORE padding: avoids materializing a full f32
    # padded intermediate in HBM on the bf16 path.
    x_p = jnp.pad(x.astype(cdt), ((0, B_pad - B), (0, IN_PAD - IN_DIM)))

    def rep(shape):
        # Grid-invariant, single-buffered blocks: constant index_map keeps the
        # weights resident in VMEM across batch tiles; Buffered(1) drops the
        # useless second pipeline buffer.
        return pl.BlockSpec(shape, lambda i: (0, 0), pipeline_mode=pl.Buffered(1))

    out_pad = pl.pallas_call(
        mlp_kernel,
        out_shape=jax.ShapeDtypeStruct((B_pad, OUT_PAD), jnp.float32),
        grid_spec=pltpu.PrefetchScalarGridSpec(
            num_scalar_prefetch=0,
            grid=(B_pad // tile,),
            in_specs=[
                pl.BlockSpec((tile, IN_PAD), lambda i: (i, 0)),
                rep((IN_PAD, HID_PAD)), rep((1, HID_PAD)),
                rep((HID_PAD, HID_PAD)), rep((1, HID_PAD)),
                rep((HID_PAD, HID_PAD)), rep((1, HID_PAD)),
                rep((HID_PAD, HID_PAD)), rep((1, HID_PAD)),
                rep((HID_PAD, OUT_PAD)), rep((1, OUT_PAD)),
            ],
            out_specs=pl.BlockSpec((tile, OUT_PAD), lambda i: (i, 0)),
        ),
        compiler_params=pltpu.CompilerParams(
            dimension_semantics=("parallel",),
            vmem_limit_bytes=32 * 1024 * 1024,   # real need <12 MiB; safe on v7x (64 MiB phys)
        ),
    )(x_p, w1p, b1p, w2p, b2p, w3p, b3p, w4p, b4p, w5p, b5p)

    return out_pad[:B, :OUT_DIM]


def net_forward_ref(x, params):
    """Pure-JAX f32 reference for correctness checking."""
    h = x.astype(jnp.float32)
    for i, (w, b) in enumerate(params):
        h = h @ w + b
        if i < len(params) - 1:
            h = jnp.maximum(h, 0.0)
    return h


if __name__ == "__main__":
    key = jax.random.PRNGKey(0)
    pkey, xkey1, xkey2 = jax.random.split(key, 3)

    params = init_params(pkey)
    padded_bf16 = prepare_params(params)                   # default: bf16 compute
    padded_f32 = prepare_params(params, use_bf16=False)    # exact f32 path

    # Small batch: single grid step, bf16 tile rounds up to 16 rows.
    x_small = jax.random.normal(xkey1, (4, IN_DIM), jnp.float32)
    ref_small = net_forward_ref(x_small, params)

    out_small_bf16 = jax.block_until_ready(net_forward(x_small, padded_bf16))
    assert out_small_bf16.shape == (4, OUT_DIM), out_small_bf16.shape
    assert jnp.allclose(out_small_bf16, ref_small, atol=5e-2, rtol=5e-2)

    out_small_f32 = jax.block_until_ready(net_forward(x_small, padded_f32))
    assert out_small_f32.shape == (4, OUT_DIM), out_small_f32.shape
    assert jnp.allclose(out_small_f32, ref_small, atol=1e-4, rtol=1e-4)

    # Larger batch: exercises the >=2-step parallel grid (256-row tiles here).
    x_big = jax.random.normal(xkey2, (512, IN_DIM), jnp.float32)
    ref_big = net_forward_ref(x_big, params)

    out_big_bf16 = jax.block_until_ready(net_forward(x_big, padded_bf16))
    assert out_big_bf16.shape == (512, OUT_DIM), out_big_bf16.shape
    assert jnp.all(jnp.isfinite(out_big_bf16))
    assert jnp.allclose(out_big_bf16, ref_big, atol=5e-2, rtol=5e-2)

    out_big_f32 = jax.block_until_ready(net_forward(x_big, padded_f32))
    assert out_big_f32.shape == (512, OUT_DIM), out_big_f32.shape
    assert jnp.allclose(out_big_f32, ref_big, atol=1e-3, rtol=1e-3)

    print("KERNEL_OK")
</pallas_src>

<mosaic_0001>
module attributes {stable_mosaic.version = 11 : i64} {
  func.func @mlp_kernel(%arg0: i32, %arg1: memref<16x896xbf16, #tpu.memory_space<vmem>>, %arg2: memref<896x256xbf16, #tpu.memory_space<vmem>>, %arg3: memref<1x256xf32, #tpu.memory_space<vmem>>, %arg4: memref<256x256xbf16, #tpu.memory_space<vmem>>, %arg5: memref<1x256xf32, #tpu.memory_space<vmem>>, %arg6: memref<256x256xbf16, #tpu.memory_space<vmem>>, %arg7: memref<1x256xf32, #tpu.memory_space<vmem>>, %arg8: memref<256x256xbf16, #tpu.memory_space<vmem>>, %arg9: memref<1x256xf32, #tpu.memory_space<vmem>>, %arg10: memref<256x128xbf16, #tpu.memory_space<vmem>>, %arg11: memref<1x128xf32, #tpu.memory_space<vmem>>, %arg12: memref<16x128xf32, #tpu.memory_space<vmem>>) attributes {dimension_semantics = [#tpu.dimension_semantics<parallel>], iteration_bounds = array<i64: 1>, scalar_prefetch = 0 : i64, scratch_operands = 0 : i64, tpu.core_type = #tpu.core_type<tc>, window_params = [{transform_indices = @transform_0, window_bounds = array<i64: 16, 896>}, {pipeline_mode = #tpu.pipeline_mode<synchronous>, transform_indices = @transform_1, window_bounds = array<i64: 896, 256>}, {pipeline_mode = #tpu.pipeline_mode<synchronous>, transform_indices = @transform_2, window_bounds = array<i64: 1, 256>}, {pipeline_mode = #tpu.pipeline_mode<synchronous>, transform_indices = @transform_3, window_bounds = array<i64: 256, 256>}, {pipeline_mode = #tpu.pipeline_mode<synchronous>, transform_indices = @transform_4, window_bounds = array<i64: 1, 256>}, {pipeline_mode = #tpu.pipeline_mode<synchronous>, transform_indices = @transform_5, window_bounds = array<i64: 256, 256>}, {pipeline_mode = #tpu.pipeline_mode<synchronous>, transform_indices = @transform_6, window_bounds = array<i64: 1, 256>}, {pipeline_mode = #tpu.pipeline_mode<synchronous>, transform_indices = @transform_7, window_bounds = array<i64: 256, 256>}, {pipeline_mode = #tpu.pipeline_mode<synchronous>, transform_indices = @transform_8, window_bounds = array<i64: 1, 256>}, {pipeline_mode = #tpu.pipeline_mode<synchronous>, transform_indices = @transform_9, window_bounds = array<i64: 256, 128>}, {pipeline_mode = #tpu.pipeline_mode<synchronous>, transform_indices = @transform_10, window_bounds = array<i64: 1, 128>}, {transform_indices = @transform_11, window_bounds = array<i64: 16, 128>}]} {
    %c0 = arith.constant 0 : index
    %c0_0 = arith.constant 0 : index
    %0 = vector.load %arg1[%c0, %c0_0] : memref<16x896xbf16, #tpu.memory_space<vmem>>, vector<16x896xbf16>
    %c0_1 = arith.constant 0 : index
    %c0_2 = arith.constant 0 : index
    %1 = vector.load %arg2[%c0_1, %c0_2] : memref<896x256xbf16, #tpu.memory_space<vmem>>, vector<896x256xbf16>
    %cst = arith.constant dense<0.000000e+00> : vector<16x256xf32>
    %2 = tpu.matmul %0, %1, %cst {dimension_numbers = #tpu.dot_dimension_numbers<[1], [0], [0], [1], [0, 0, 1, 1], [], []>} : vector<16x896xbf16>, vector<896x256xbf16>, vector<16x256xf32> -> vector<16x256xf32>
    %c0_3 = arith.constant 0 : index
    %c0_4 = arith.constant 0 : index
    %3 = vector.load %arg3[%c0_3, %c0_4] : memref<1x256xf32, #tpu.memory_space<vmem>>, vector<1x256xf32>
    %4 = vector.broadcast %3 : vector<1x256xf32> to vector<16x256xf32>
    %5 = arith.addf %2, %4 : vector<16x256xf32>
    %cst_5 = arith.constant 0.000000e+00 : f32
    %6 = vector.broadcast %cst_5 : f32 to vector<16x256xf32>
    %7 = arith.maximumf %5, %6 : vector<16x256xf32>
    %8 = arith.truncf %7 : vector<16x256xf32> to vector<16x256xbf16>
    %c0_6 = arith.constant 0 : index
    %c0_7 = arith.constant 0 : index
    %9 = vector.load %arg4[%c0_6, %c0_7] : memref<256x256xbf16, #tpu.memory_space<vmem>>, vector<256x256xbf16>
    %cst_8 = arith.constant dense<0.000000e+00> : vector<16x256xf32>
    %10 = tpu.matmul %8, %9, %cst_8 {dimension_numbers = #tpu.dot_dimension_numbers<[1], [0], [0], [1], [0, 0, 1, 1], [], []>} : vector<16x256xbf16>, vector<256x256xbf16>, vector<16x256xf32> -> vector<16x256xf32>
    %c0_9 = arith.constant 0 : index
    %c0_10 = arith.constant 0 : index
    %11 = vector.load %arg5[%c0_9, %c0_10] : memref<1x256xf32, #tpu.memory_space<vmem>>, vector<1x256xf32>
    %12 = vector.broadcast %11 : vector<1x256xf32> to vector<16x256xf32>
    %13 = arith.addf %10, %12 : vector<16x256xf32>
    %cst_11 = arith.constant 0.000000e+00 : f32
    %14 = vector.broadcast %cst_11 : f32 to vector<16x256xf32>
    %15 = arith.maximumf %13, %14 : vector<16x256xf32>
    %16 = arith.truncf %15 : vector<16x256xf32> to vector<16x256xbf16>
    %c0_12 = arith.constant 0 : index
    %c0_13 = arith.constant 0 : index
    %17 = vector.load %arg6[%c0_12, %c0_13] : memref<256x256xbf16, #tpu.memory_space<vmem>>, vector<256x256xbf16>
    %cst_14 = arith.constant dense<0.000000e+00> : vector<16x256xf32>
    %18 = tpu.matmul %16, %17, %cst_14 {dimension_numbers = #tpu.dot_dimension_numbers<[1], [0], [0], [1], [0, 0, 1, 1], [], []>} : vector<16x256xbf16>, vector<256x256xbf16>, vector<16x256xf32> -> vector<16x256xf32>
    %c0_15 = arith.constant 0 : index
    %c0_16 = arith.constant 0 : index
    %19 = vector.load %arg7[%c0_15, %c0_16] : memref<1x256xf32, #tpu.memory_space<vmem>>, vector<1x256xf32>
    %20 = vector.broadcast %19 : vector<1x256xf32> to vector<16x256xf32>
    %21 = arith.addf %18, %20 : vector<16x256xf32>
    %cst_17 = arith.constant 0.000000e+00 : f32
    %22 = vector.broadcast %cst_17 : f32 to vector<16x256xf32>
    %23 = arith.maximumf %21, %22 : vector<16x256xf32>
    %24 = arith.truncf %23 : vector<16x256xf32> to vector<16x256xbf16>
    %c0_18 = arith.constant 0 : index
    %c0_19 = arith.constant 0 : index
    %25 = vector.load %arg8[%c0_18, %c0_19] : memref<256x256xbf16, #tpu.memory_space<vmem>>, vector<256x256xbf16>
    %cst_20 = arith.constant dense<0.000000e+00> : vector<16x256xf32>
    %26 = tpu.matmul %24, %25, %cst_20 {dimension_numbers = #tpu.dot_dimension_numbers<[1], [0], [0], [1], [0, 0, 1, 1], [], []>} : vector<16x256xbf16>, vector<256x256xbf16>, vector<16x256xf32> -> vector<16x256xf32>
    %c0_21 = arith.constant 0 : index
    %c0_22 = arith.constant 0 : index
    %27 = vector.load %arg9[%c0_21, %c0_22] : memref<1x256xf32, #tpu.memory_space<vmem>>, vector<1x256xf32>
    %28 = vector.broadcast %27 : vector<1x256xf32> to vector<16x256xf32>
    %29 = arith.addf %26, %28 : vector<16x256xf32>
    %cst_23 = arith.constant 0.000000e+00 : f32
    %30 = vector.broadcast %cst_23 : f32 to vector<16x256xf32>
    %31 = arith.maximumf %29, %30 : vector<16x256xf32>
    %32 = arith.truncf %31 : vector<16x256xf32> to vector<16x256xbf16>
    %c0_24 = arith.constant 0 : index
    %c0_25 = arith.constant 0 : index
    %33 = vector.load %arg10[%c0_24, %c0_25] : memref<256x128xbf16, #tpu.memory_space<vmem>>, vector<256x128xbf16>
    %cst_26 = arith.constant dense<0.000000e+00> : vector<16x128xf32>
    %34 = tpu.matmul %32, %33, %cst_26 {dimension_numbers = #tpu.dot_dimension_numbers<[1], [0], [0], [1], [0, 0, 1, 1], [], []>} : vector<16x256xbf16>, vector<256x128xbf16>, vector<16x128xf32> -> vector<16x128xf32>
    %c0_27 = arith.constant 0 : index
    %c0_28 = arith.constant 0 : index
    %35 = vector.load %arg11[%c0_27, %c0_28] : memref<1x128xf32, #tpu.memory_space<vmem>>, vector<1x128xf32>
    %36 = vector.broadcast %35 : vector<1x128xf32> to vector<16x128xf32>
    %37 = arith.addf %34, %36 : vector<16x128xf32>
    %c0_29 = arith.constant 0 : index
    %c0_30 = arith.constant 0 : index
    %38 = vector.load %arg12[%c0_29, %c0_30] : memref<16x128xf32, #tpu.memory_space<vmem>>, vector<16x128xf32>
    tpu.vector_store %arg12[%c0_29, %c0_30], %37 {strides = array<i32>} : memref<16x128xf32, #tpu.memory_space<vmem>>, vector<16x128xf32>,
    return
  }
  func.func @transform_0(%arg0: i32) -> (i32, i32) {
    %c0_i32 = arith.constant 0 : i32
    %c0_i32_0 = arith.constant 0 : i32
    return %arg0, %c0_i32 : i32, i32
  }
  func.func @transform_1(%arg0: i32) -> (i32, i32) {
    %c0_i32 = arith.constant 0 : i32
    %c0_i32_0 = arith.constant 0 : i32
    %c0_i32_1 = arith.constant 0 : i32
    return %c0_i32, %c0_i32_0 : i32, i32
  }
  func.func @transform_2(%arg0: i32) -> (i32, i32) {
    %c0_i32 = arith.constant 0 : i32
    %c0_i32_0 = arith.constant 0 : i32
    %c0_i32_1 = arith.constant 0 : i32
    return %c0_i32, %c0_i32_0 : i32, i32
  }
  func.func @transform_3(%arg0: i32) -> (i32, i32) {
    %c0_i32 = arith.constant 0 : i32
    %c0_i32_0 = arith.constant 0 : i32
    %c0_i32_1 = arith.constant 0 : i32
    return %c0_i32, %c0_i32_0 : i32, i32
  }
  func.func @transform_4(%arg0: i32) -> (i32, i32) {
    %c0_i32 = arith.constant 0 : i32
    %c0_i32_0 = arith.constant 0 : i32
    %c0_i32_1 = arith.constant 0 : i32
    return %c0_i32, %c0_i32_0 : i32, i32
  }
  func.func @transform_5(%arg0: i32) -> (i32, i32) {
    %c0_i32 = arith.constant 0 : i32
    %c0_i32_0 = arith.constant 0 : i32
    %c0_i32_1 = arith.constant 0 : i32
    return %c0_i32, %c0_i32_0 : i32, i32
  }
  func.func @transform_6(%arg0: i32) -> (i32, i32) {
    %c0_i32 = arith.constant 0 : i32
    %c0_i32_0 = arith.constant 0 : i32
    %c0_i32_1 = arith.constant 0 : i32
    return %c0_i32, %c0_i32_0 : i32, i32
  }
  func.func @transform_7(%arg0: i32) -> (i32, i32) {
    %c0_i32 = arith.constant 0 : i32
    %c0_i32_0 = arith.constant 0 : i32
    %c0_i32_1 = arith.constant 0 : i32
    return %c0_i32, %c0_i32_0 : i32, i32
  }
  func.func @transform_8(%arg0: i32) -> (i32, i32) {
    %c0_i32 = arith.constant 0 : i32
    %c0_i32_0 = arith.constant 0 : i32
    %c0_i32_1 = arith.constant 0 : i32
    return %c0_i32, %c0_i32_0 : i32, i32
  }
  func.func @transform_9(%arg0: i32) -> (i32, i32) {
    %c0_i32 = arith.constant 0 : i32
    %c0_i32_0 = arith.constant 0 : i32
    %c0_i32_1 = arith.constant 0 : i32
    return %c0_i32, %c0_i32_0 : i32, i32
  }
  func.func @transform_10(%arg0: i32) -> (i32, i32) {
    %c0_i32 = arith.constant 0 : i32
    %c0_i32_0 = arith.constant 0 : i32
    %c0_i32_1 = arith.constant 0 : i32
    return %c0_i32, %c0_i32_0 : i32, i32
  }
  func.func @transform_11(%arg0: i32) -> (i32, i32) {
    %c0_i32 = arith.constant 0 : i32
    %c0_i32_0 = arith.constant 0 : i32
    return %arg0, %c0_i32 : i32, i32
  }
}

</mosaic_0001>

<llo_original>
// kernel: net_forward.1
$region0: #{net_forward.1}
  #allocation0 [shape = 'u32[]', space=smem, size = 0x4, offset = 0x4, fixed_abs, tag = 'smem constant byte address 0x4 - core index']
  #allocation1 [shape = 'u32[144,128]{1,0:T(1,128)}', space=vmem, size = 0x12000, scoped, tag = 'internal scratch']
  %s0 = inlined_call_operand.vmem [shape: bf16[16,896], index: 0, kind: input, shape index: {}]
  %s1 = inlined_call_operand.hbm [shape: bf16[896,256], index: 1, kind: input, shape index: {}]
  %s2 = inlined_call_operand.vmem [shape: f32[1,256], index: 2, kind: input, shape index: {}]
  %s3 = inlined_call_operand.hbm [shape: bf16[256,256], index: 3, kind: input, shape index: {}]
  %s4 = inlined_call_operand.vmem [shape: f32[1,256], index: 4, kind: input, shape index: {}]
  %s5 = inlined_call_operand.hbm [shape: bf16[256,256], index: 5, kind: input, shape index: {}]
  %s6 = inlined_call_operand.vmem [shape: f32[1,256], index: 6, kind: input, shape index: {}]
  %s7 = inlined_call_operand.hbm [shape: bf16[256,256], index: 7, kind: input, shape index: {}]
  %s8 = inlined_call_operand.vmem [shape: f32[1,256], index: 8, kind: input, shape index: {}]
  %s9 = inlined_call_operand.vmem [shape: bf16[256,128], index: 9, kind: input, shape index: {}]
  %s10 = inlined_call_operand.vmem [shape: f32[1,128], index: 10, kind: input, shape index: {}]
  %s11 = inlined_call_operand.vmem [shape: f32[16,128], index: 11, kind: output, shape index: {}]
  %s12 = sld [smem:[#allocation0]]
  $region70: #{net_forward.1} parent=0
    _
  %s14 = ssub.s32 1, %s12
  %s15 = scalar_select 0, %s14, %s12
  $region1: #{net_forward.1} parent=0
    #allocation2 [shape = 'u8[458752]{0}', space=vmem, size = 0x70000, scoped, tag = 'input window, operand 1, single buffered']
    #allocation3 [shape = 's32[1]{0}', space=sflag, size = 0x4, scoped, tag = 'scoped memory for net_forward.1']
    #allocation4 [shape = 'u8[131072]{0}', space=vmem, size = 0x20000, scoped, tag = 'input window, operand 3, single buffered']
    #allocation5 [shape = 's32[1]{0}', space=sflag, size = 0x4, scoped, tag = 'scoped memory for net_forward.1']
    #allocation6 [shape = 'u8[131072]{0}', space=vmem, size = 0x20000, scoped, tag = 'input window, operand 5, single buffered']
    #allocation7 [shape = 'u8[131072]{0}', space=vmem, size = 0x20000, scoped, tag = 'input window, operand 7, single buffered']
    #allocation8 [shape = 's32[1]{0}', space=sflag, size = 0x4, scoped, tag = 'scoped memory for net_forward.1']
    %16 = vsyncpa [#allocation3], 0
    %17 = vsyncpa [#allocation5], 0
    %18 = vsyncpa [#allocation8], 0
    // Predicated region
    $region2: #{net_forward.1} parent=1 // pred_check
      _
    $region3: #{net_forward.1} parent=1 // pred_check_branch
      %20 = sbr.rel (0) target = $region5
    $region4: #{net_forward.1} parent=1 // pred_region
      _
    $region5: #{net_forward.1} parent=1 // pred_fallthru
      _
    // Predicated region
    $region6: #{net_forward.1} parent=1 // pred_check
      _
    $region7: #{net_forward.1} parent=1 // pred_check_branch
      %22 = sbr.rel (0) target = $region9
    $region8: #{net_forward.1} parent=1 // pred_region
      %s24 = ssub.s32 14336, 14336
      %25 = vsyncadd [#allocation3], %s24
      %s26 = sshll.u32 [#allocation2], 4
      %s27 = int_to_ptr.vmem [resolvable:$true] %s26
      %32 = dma.hbm_to_vmem [thread:$0]  %s1, 14336, %s27, [#allocation3], 128, 128, 8
    $region9: #{net_forward.1} parent=1 // pred_fallthru
      _
    // Predicated region
    $region10: #{net_forward.1} parent=1 // pred_check
      _
    $region11: #{net_forward.1} parent=1 // pred_check_branch
      %34 = sbr.rel (0) target = $region13
    $region12: #{net_forward.1} parent=1 // pred_region
      _
    $region13: #{net_forward.1} parent=1 // pred_fallthru
      _
    // Predicated region
    $region14: #{net_forward.1} parent=1 // pred_check
      _
    $region15: #{net_forward.1} parent=1 // pred_check_branch
      %36 = sbr.rel (0) target = $region17
    $region16: #{net_forward.1} parent=1 // pred_region
      %s38 = ssub.s32 4096, 4096
      %39 = vsyncadd [#allocation5], %s38
      %s40 = sshll.u32 [#allocation4], 4
      %s41 = int_to_ptr.vmem [resolvable:$true] %s40
      %46 = dma.hbm_to_vmem [thread:$0]  %s3, 4096, %s41, [#allocation5], 128, 128, 8
    $region17: #{net_forward.1} parent=1 // pred_fallthru
      _
    // Predicated region
    $region18: #{net_forward.1} parent=1 // pred_check
      _
    $region19: #{net_forward.1} parent=1 // pred_check_branch
      %48 = sbr.rel (0) target = $region21
    $region20: #{net_forward.1} parent=1 // pred_region
      _
    $region21: #{net_forward.1} parent=1 // pred_fallthru
      _
    // Predicated region
    $region22: #{net_forward.1} parent=1 // pred_check
      _
    $region23: #{net_forward.1} parent=1 // pred_check_branch
      %50 = sbr.rel (0) target = $region25
    $region24: #{net_forward.1} parent=1 // pred_region
      %s52 = ssub.s32 4096, 4096
      %53 = vsyncadd [#allocation5], %s52
      %s54 = sshll.u32 [#allocation6], 4
      %s55 = int_to_ptr.vmem [resolvable:$true] %s54
      %60 = dma.hbm_to_vmem [thread:$0]  %s5, 4096, %s55, [#allocation5], 128, 128, 8
    $region25: #{net_forward.1} parent=1 // pred_fallthru
      _
    // Predicated region
    $region26: #{net_forward.1} parent=1 // pred_check
      _
    $region27: #{net_forward.1} parent=1 // pred_check_branch
      %62 = sbr.rel (0) target = $region29
    $region28: #{net_forward.1} parent=1 // pred_region
      _
    $region29: #{net_forward.1} parent=1 // pred_fallthru
      _
    // Predicated region
    $region30: #{net_forward.1} parent=1 // pred_check
      _
    $region31: #{net_forward.1} parent=1 // pred_check_branch
      %64 = sbr.rel (0) target = $region33
    $region32: #{net_forward.1} parent=1 // pred_region
      %s66 = ssub.s32 4096, 4096
      %67 = vsyncadd [#allocation8], %s66
      %s68 = sshll.u32 [#allocation7], 4
      %s69 = int_to_ptr.vmem [resolvable:$true] %s68
      %74 = dma.hbm_to_vmem [thread:$0]  %s7, 4096, %s69, [#allocation8], 128, 128, 8
    $region33: #{net_forward.1} parent=1 // pred_fallthru
      _
    // Predicated region
    $region34: #{net_forward.1} parent=1 // pred_check
      _
    $region35: #{net_forward.1} parent=1 // pred_check_branch
      %76 = sbr.rel (0) target = $region37
    $region36: #{net_forward.1} parent=1 // pred_region
      _
    $region37: #{net_forward.1} parent=1 // pred_fallthru
      _
    // Predicated region
    $region38: #{net_forward.1} parent=1 // pred_check
      _
    $region39: #{net_forward.1} parent=1 // pred_check_branch
      %78 = sbr.rel (0) target = $region41
    $region40: #{net_forward.1} parent=1 // pred_region
      _
    $region41: #{net_forward.1} parent=1 // pred_fallthru
      _
    // Predicated region
    $region42: #{net_forward.1} parent=1 // pred_check
      _
    $region43: #{net_forward.1} parent=1 // pred_check_branch
      %80 = sbr.rel (0) target = $region45
    $region44: #{net_forward.1} parent=1 // pred_region
      _
    $region45: #{net_forward.1} parent=1 // pred_fallthru
      _
    // Predicated region
    $region46: #{net_forward.1} parent=1 // pred_check
      _
    $region47: #{net_forward.1} parent=1 // pred_check_branch
      %82 = sbr.rel (0) target = $region49
    $region48: #{net_forward.1} parent=1 // pred_region
      %83 = dma.done [#allocation3], 14336
    $region49: #{net_forward.1} parent=1 // pred_fallthru
      _
    // Predicated region
    $region50: #{net_forward.1} parent=1 // pred_check
      _
    $region51: #{net_forward.1} parent=1 // pred_check_branch
      %85 = sbr.rel (0) target = $region53
    $region52: #{net_forward.1} parent=1 // pred_region
      %86 = dma.done [#allocation5], 4096
    $region53: #{net_forward.1} parent=1 // pred_fallthru
      _
    // Predicated region
    $region54: #{net_forward.1} parent=1 // pred_check
      _
    $region55: #{net_forward.1} parent=1 // pred_check_branch
      %88 = sbr.rel (0) target = $region57
    $region56: #{net_forward.1} parent=1 // pred_region
      %89 = dma.done [#allocation5], 4096
    $region57: #{net_forward.1} parent=1 // pred_fallthru
      _
    // Predicated region
    $region58: #{net_forward.1} parent=1 // pred_check
      _
    $region59: #{net_forward.1} parent=1 // pred_check_branch
      %91 = sbr.rel (0) target = $region61
    $region60: #{net_forward.1} parent=1 // pred_region
      %92 = dma.done [#allocation8], 4096
    $region61: #{net_forward.1} parent=1 // pred_fallthru
      _
    %v94 = vld [vmem:[%s0] sm:$0xff]
    %v95 = vld [vmem:[%s0 + $0x8] sm:$0xff]
    %v96 = vld [vmem:[%s0 + $0x10] sm:$0xff]
    %v97 = vld [vmem:[%s0 + $0x18] sm:$0xf]
    %v98 = vld [vmem:[%s0 + $0x1c] sm:$0xff]
    %v99 = vld [vmem:[%s0 + $0x24] sm:$0xff]
    %v100 = vld [vmem:[%s0 + $0x2c] sm:$0xff]
    %v101 = vld [vmem:[%s0 + $0x34] sm:$0xf]
    %v102 = vld [vmem:[#allocation2] sm:$0xff]
    %v103 = vld [vmem:[#allocation2 + $0x8] sm:$0xff]
    %v104 = vld [vmem:[#allocation2 + $0x10] sm:$0xff]
    %v105 = vld [vmem:[#allocation2 + $0x18] sm:$0xff]
    %v106 = vld [vmem:[#allocation2 + $0x20] sm:$0xff]
    %v107 = vld [vmem:[#allocation2 + $0x28] sm:$0xff]
    %v108 = vld [vmem:[#allocation2 + $0x30] sm:$0xff]
    %v109 = vld [vmem:[#allocation2 + $0x38] sm:$0xff]
    %v110 = vld [vmem:[#allocation2 + $0x40] sm:$0xff]
    %v111 = vld [vmem:[#allocation2 + $0x48] sm:$0xff]
    %v112 = vld [vmem:[#allocation2 + $0x50] sm:$0xff]
    %v113 = vld [vmem:[#allocation2 + $0x58] sm:$0xff]
    %v114 = vld [vmem:[#allocation2 + $0x60] sm:$0xff]
    %v115 = vld [vmem:[#allocation2 + $0x68] sm:$0xff]
    %v116 = vld [vmem:[#allocation2 + $0x70] sm:$0xff]
    %v117 = vld [vmem:[#allocation2 + $0x78] sm:$0xff]
    %v118 = vld [vmem:[#allocation2 + $0x80] sm:$0xff]
    %v119 = vld [vmem:[#allocation2 + $0x88] sm:$0xff]
    %v120 = vld [vmem:[#allocation2 + $0x90] sm:$0xff]
    %v121 = vld [vmem:[#allocation2 + $0x98] sm:$0xff]
    %v122 = vld [vmem:[#allocation2 + $0xa0] sm:$0xff]
    %v123 = vld [vmem:[#allocation2 + $0xa8] sm:$0xff]
    %v124 = vld [vmem:[#allocation2 + $0xb0] sm:$0xff]
    %v125 = vld [vmem:[#allocation2 + $0xb8] sm:$0xff]
    %v126 = vld [vmem:[#allocation2 + $0xc0] sm:$0xff]
    %v127 = vld [vmem:[#allocation2 + $0xc8] sm:$0xff]
    %v128 = vld [vmem:[#allocation2 + $0xd0] sm:$0xff]
    %v129 = vld [vmem:[#allocation2 + $0xd8] sm:$0xff]
    %v130 = vld [vmem:[#allocation2 + $0xe0] sm:$0xff]
    %v131 = vld [vmem:[#allocation2 + $0xe8] sm:$0xff]
    %v132 = vld [vmem:[#allocation2 + $0xf0] sm:$0xff]
    %v133 = vld [vmem:[#allocation2 + $0xf8] sm:$0xff]
    %v134 = vld [vmem:[#allocation2 + $0x100] sm:$0xff]
    %v135 = vld [vmem:[#allocation2 + $0x108] sm:$0xff]
    %v136 = vld [vmem:[#allocation2 + $0x110] sm:$0xff]
    %v137 = vld [vmem:[#allocation2 + $0x118] sm:$0xff]
    %v138 = vld [vmem:[#allocation2 + $0x120] sm:$0xff]
    %v139 = vld [vmem:[#allocation2 + $0x128] sm:$0xff]
    %v140 = vld [vmem:[#allocation2 + $0x130] sm:$0xff]
    %v141 = vld [vmem:[#allocation2 + $0x138] sm:$0xff]
    %v142 = vld [vmem:[#allocation2 + $0x140] sm:$0xff]
    %v143 = vld [vmem:[#allocation2 + $0x148] sm:$0xff]
    %v144 = vld [vmem:[#allocation2 + $0x150] sm:$0xff]
    %v145 = vld [vmem:[#allocation2 + $0x158] sm:$0xff]
    %v146 = vld [vmem:[#allocation2 + $0x160] sm:$0xff]
    %v147 = vld [vmem:[#allocation2 + $0x168] sm:$0xff]
    %v148 = vld [vmem:[#allocation2 + $0x170] sm:$0xff]
    %v149 = vld [vmem:[#allocation2 + $0x178] sm:$0xff]
    %v150 = vld [vmem:[#allocation2 + $0x180] sm:$0xff]
    %v151 = vld [vmem:[#allocation2 + $0x188] sm:$0xff]
    %v152 = vld [vmem:[#allocation2 + $0x190] sm:$0xff]
    %v153 = vld [vmem:[#allocation2 + $0x198] sm:$0xff]
    %v154 = vld [vmem:[#allocation2 + $0x1a0] sm:$0xff]
    %v155 = vld [vmem:[#allocation2 + $0x1a8] sm:$0xff]
    %v156 = vld [vmem:[#allocation2 + $0x1b0] sm:$0xff]
    %v157 = vld [vmem:[#allocation2 + $0x1b8] sm:$0xff]
    %v158 = vld [vmem:[#allocation2 + $0x1c0] sm:$0xff]
    %v159 = vld [vmem:[#allocation2 + $0x1c8] sm:$0xff]
    %v160 = vld [vmem:[#allocation2 + $0x1d0] sm:$0xff]
    %v161 = vld [vmem:[#allocation2 + $0x1d8] sm:$0xff]
    %v162 = vld [vmem:[#allocation2 + $0x1e0] sm:$0xff]
    %v163 = vld [vmem:[#allocation2 + $0x1e8] sm:$0xff]
    %v164 = vld [vmem:[#allocation2 + $0x1f0] sm:$0xff]
    %v165 = vld [vmem:[#allocation2 + $0x1f8] sm:$0xff]
    %v166 = vld [vmem:[#allocation2 + $0x200] sm:$0xff]
    %v167 = vld [vmem:[#allocation2 + $0x208] sm:$0xff]
    %v168 = vld [vmem:[#allocation2 + $0x210] sm:$0xff]
    %v169 = vld [vmem:[#allocation2 + $0x218] sm:$0xff]
    %v170 = vld [vmem:[#allocation2 + $0x220] sm:$0xff]
    %v171 = vld [vmem:[#allocation2 + $0x228] sm:$0xff]
    %v172 = vld [vmem:[#allocation2 + $0x230] sm:$0xff]
    %v173 = vld [vmem:[#allocation2 + $0x238] sm:$0xff]
    %v174 = vld [vmem:[#allocation2 + $0x240] sm:$0xff]
    %v175 = vld [vmem:[#allocation2 + $0x248] sm:$0xff]
    %v176 = vld [vmem:[#allocation2 + $0x250] sm:$0xff]
    %v177 = vld [vmem:[#allocation2 + $0x258] sm:$0xff]
    %v178 = vld [vmem:[#allocation2 + $0x260] sm:$0xff]
    %v179 = vld [vmem:[#allocation2 + $0x268] sm:$0xff]
    %v180 = vld [vmem:[#allocation2 + $0x270] sm:$0xff]
    %v181 = vld [vmem:[#allocation2 + $0x278] sm:$0xff]
    %v182 = vld [vmem:[#allocation2 + $0x280] sm:$0xff]
    %v183 = vld [vmem:[#allocation2 + $0x288] sm:$0xff]
    %v184 = vld [vmem:[#allocation2 + $0x290] sm:$0xff]
    %v185 = vld [vmem:[#allocation2 + $0x298] sm:$0xff]
    %v186 = vld [vmem:[#allocation2 + $0x2a0] sm:$0xff]
    %v187 = vld [vmem:[#allocation2 + $0x2a8] sm:$0xff]
    %v188 = vld [vmem:[#allocation2 + $0x2b0] sm:$0xff]
    %v189 = vld [vmem:[#allocation2 + $0x2b8] sm:$0xff]
    %v190 = vld [vmem:[#allocation2 + $0x2c0] sm:$0xff]
    %v191 = vld [vmem:[#allocation2 + $0x2c8] sm:$0xff]
    %v192 = vld [vmem:[#allocation2 + $0x2d0] sm:$0xff]
    %v193 = vld [vmem:[#allocation2 + $0x2d8] sm:$0xff]
    %v194 = vld [vmem:[#allocation2 + $0x2e0] sm:$0xff]
    %v195 = vld [vmem:[#allocation2 + $0x2e8] sm:$0xff]
    %v196 = vld [vmem:[#allocation2 + $0x2f0] sm:$0xff]
    %v197 = vld [vmem:[#allocation2 + $0x2f8] sm:$0xff]
    %v198 = vld [vmem:[#allocation2 + $0x300] sm:$0xff]
    %v199 = vld [vmem:[#allocation2 + $0x308] sm:$0xff]
    %v200 = vld [vmem:[#allocation2 + $0x310] sm:$0xff]
    %v201 = vld [vmem:[#allocation2 + $0x318] sm:$0xff]
    %v202 = vld [vmem:[#allocation2 + $0x320] sm:$0xff]
    %v203 = vld [vmem:[#allocation2 + $0x328] sm:$0xff]
    %v204 = vld [vmem:[#allocation2 + $0x330] sm:$0xff]
    %v205 = vld [vmem:[#allocation2 + $0x338] sm:$0xff]
    %v206 = vld [vmem:[#allocation2 + $0x340] sm:$0xff]
    %v207 = vld [vmem:[#allocation2 + $0x348] sm:$0xff]
    %v208 = vld [vmem:[#allocation2 + $0x350] sm:$0xff]
    %v209 = vld [vmem:[#allocation2 + $0x358] sm:$0xff]
    %v210 = vld [vmem:[#allocation2 + $0x360] sm:$0xff]
    %v211 = vld [vmem:[#allocation2 + $0x368] sm:$0xff]
    %v212 = vld [vmem:[#allocation2 + $0x370] sm:$0xff]
    %v213 = vld [vmem:[#allocation2 + $0x378] sm:$0xff]
    %v214 = vld [vmem:[%s2] sm:$0x3]
    %v216 = vlaneseq
    %v217 = vshrl.u32 %v216, 7
    %v218 = vsub.s32 0, %v217
    %v219 = vrot.slane %v214, %v218
    %v220 = vlaneseq
    %v221 = vshrl.u32 %v220, 7
    %v222 = vsub.s32 1, %v221
    %v223 = vrot.slane %v214, %v222
    %v234 = vunpack.c.l.b16 %v94
    %v235 = vunpack.c.h.b16 %v94
    %v236 = vunpack.c.l.b16 %v95
    %v237 = vunpack.c.h.b16 %v95
    %v238 = vunpack.c.l.b16 %v96
    %v239 = vunpack.c.h.b16 %v96
    %v240 = vunpack.c.l.b16 %v97
    %v241 = vunpack.c.l.b16 %v98
    %v242 = vunpack.c.h.b16 %v98
    %v243 = vunpack.c.l.b16 %v99
    %v244 = vunpack.c.h.b16 %v99
    %v245 = vunpack.c.l.b16 %v100
    %v246 = vunpack.c.h.b16 %v100
    %v247 = vunpack.c.l.b16 %v101
    %v248 = vpack.c.b16 %v241, %v234
    %v249 = vpack.c.b16 %v242, %v235
    %v250 = vpack.c.b16 %v243, %v236
    %v251 = vpack.c.b16 %v244, %v237
    %v252 = vpack.c.b16 %v245, %v238
    %v253 = vpack.c.b16 %v246, %v239
    %v254 = vpack.c.b16 %v247, %v240
    %v374 = vunpack.c.l.b16 %v102
    %v375 = vunpack.c.h.b16 %v102
    %v376 = vunpack.c.l.b16 %v103
    %v377 = vunpack.c.h.b16 %v103
    %v378 = vunpack.c.l.b16 %v104
    %v379 = vunpack.c.h.b16 %v104
    %v380 = vunpack.c.l.b16 %v105
    %v381 = vunpack.c.h.b16 %v105
    %v382 = vunpack.c.l.b16 %v106
    %v383 = vunpack.c.h.b16 %v106
    %v384 = vunpack.c.l.b16 %v107
    %v385 = vunpack.c.h.b16 %v107
    %v386 = vunpack.c.l.b16 %v108
    %v387 = vunpack.c.h.b16 %v108
    %v388 = vunpack.c.l.b16 %v109
    %v389 = vunpack.c.h.b16 %v109
    %v390 = vunpack.c.l.b16 %v110
    %v391 = vunpack.c.h.b16 %v110
    %v392 = vunpack.c.l.b16 %v111
    %v393 = vunpack.c.h.b16 %v111
    %v394 = vunpack.c.l.b16 %v112
    %v395 = vunpack.c.h.b16 %v112
    %v396 = vunpack.c.l.b16 %v113
    %v397 = vunpack.c.h.b16 %v113
    %v398 = vunpack.c.l.b16 %v114
    %v399 = vunpack.c.h.b16 %v114
    %v400 = vunpack.c.l.b16 %v115
    %v401 = vunpack.c.h.b16 %v115
    %v402 = vunpack.c.l.b16 %v116
    %v403 = vunpack.c.h.b16 %v116
    %v404 = vunpack.c.l.b16 %v117
    %v405 = vunpack.c.h.b16 %v117
    %v406 = vunpack.c.l.b16 %v118
    %v407 = vunpack.c.h.b16 %v118
    %v408 = vunpack.c.l.b16 %v119
    %v409 = vunpack.c.h.b16 %v119
    %v410 = vunpack.c.l.b16 %v120
    %v411 = vunpack.c.h.b16 %v120
    %v412 = vunpack.c.l.b16 %v121
    %v413 = vunpack.c.h.b16 %v121
    %v414 = vunpack.c.l.b16 %v122
    %v415 = vunpack.c.h.b16 %v122
    %v416 = vunpack.c.l.b16 %v123
    %v417 = vunpack.c.h.b16 %v123
    %v418 = vunpack.c.l.b16 %v124
    %v419 = vunpack.c.h.b16 %v124
    %v420 = vunpack.c.l.b16 %v125
    %v421 = vunpack.c.h.b16 %v125
    %v422 = vunpack.c.l.b16 %v126
    %v423 = vunpack.c.h.b16 %v126
    %v424 = vunpack.c.l.b16 %v127
    %v425 = vunpack.c.h.b16 %v127
    %v426 = vunpack.c.l.b16 %v128
    %v427 = vunpack.c.h.b16 %v128
    %v428 = vunpack.c.l.b16 %v129
    %v429 = vunpack.c.h.b16 %v129
    %v430 = vunpack.c.l.b16 %v130
    %v431 = vunpack.c.h.b16 %v130
    %v432 = vunpack.c.l.b16 %v131
    %v433 = vunpack.c.h.b16 %v131
    %v434 = vunpack.c.l.b16 %v132
    %v435 = vunpack.c.h.b16 %v132
    %v436 = vunpack.c.l.b16 %v133
    %v437 = vunpack.c.h.b16 %v133
    %v438 = vunpack.c.l.b16 %v134
    %v439 = vunpack.c.h.b16 %v134
    %v440 = vunpack.c.l.b16 %v135
    %v441 = vunpack.c.h.b16 %v135
    %v442 = vunpack.c.l.b16 %v136
    %v443 = vunpack.c.h.b16 %v136
    %v444 = vunpack.c.l.b16 %v137
    %v445 = vunpack.c.h.b16 %v137
    %v446 = vunpack.c.l.b16 %v138
    %v447 = vunpack.c.h.b16 %v138
    %v448 = vunpack.c.l.b16 %v139
    %v449 = vunpack.c.h.b16 %v139
    %v450 = vunpack.c.l.b16 %v140
    %v451 = vunpack.c.h.b16 %v140
    %v452 = vunpack.c.l.b16 %v141
    %v453 = vunpack.c.h.b16 %v141
    %v454 = vunpack.c.l.b16 %v142
    %v455 = vunpack.c.h.b16 %v142
    %v456 = vunpack.c.l.b16 %v143
    %v457 = vunpack.c.h.b16 %v143
    %v458 = vunpack.c.l.b16 %v144
    %v459 = vunpack.c.h.b16 %v144
    %v460 = vunpack.c.l.b16 %v145
    %v461 = vunpack.c.h.b16 %v145
    %v462 = vunpack.c.l.b16 %v146
    %v463 = vunpack.c.h.b16 %v146
    %v464 = vunpack.c.l.b16 %v147
    %v465 = vunpack.c.h.b16 %v147
    %v466 = vunpack.c.l.b16 %v148
    %v467 = vunpack.c.h.b16 %v148
    %v468 = vunpack.c.l.b16 %v149
    %v469 = vunpack.c.h.b16 %v149
    %v470 = vunpack.c.l.b16 %v150
    %v471 = vunpack.c.h.b16 %v150
    %v472 = vunpack.c.l.b16 %v151
    %v473 = vunpack.c.h.b16 %v151
    %v474 = vunpack.c.l.b16 %v152
    %v475 = vunpack.c.h.b16 %v152
    %v476 = vunpack.c.l.b16 %v153
    %v477 = vunpack.c.h.b16 %v153
    %v478 = vunpack.c.l.b16 %v154
    %v479 = vunpack.c.h.b16 %v154
    %v480 = vunpack.c.l.b16 %v155
    %v481 = vunpack.c.h.b16 %v155
    %v482 = vunpack.c.l.b16 %v156
    %v483 = vunpack.c.h.b16 %v156
    %v484 = vunpack.c.l.b16 %v157
    %v485 = vunpack.c.h.b16 %v157
    %v486 = vunpack.c.l.b16 %v158
    %v487 = vunpack.c.h.b16 %v158
    %v488 = vunpack.c.l.b16 %v159
    %v489 = vunpack.c.h.b16 %v159
    %v490 = vunpack.c.l.b16 %v160
    %v491 = vunpack.c.h.b16 %v160
    %v492 = vunpack.c.l.b16 %v161
    %v493 = vunpack.c.h.b16 %v161
    %v494 = vunpack.c.l.b16 %v162
    %v495 = vunpack.c.h.b16 %v162
    %v496 = vunpack.c.l.b16 %v163
    %v497 = vunpack.c.h.b16 %v163
    %v498 = vunpack.c.l.b16 %v164
    %v499 = vunpack.c.h.b16 %v164
    %v500 = vunpack.c.l.b16 %v165
    %v501 = vunpack.c.h.b16 %v165
    %v502 = vunpack.c.l.b16 %v166
    %v503 = vunpack.c.h.b16 %v166
    %v504 = vunpack.c.l.b16 %v167
    %v505 = vunpack.c.h.b16 %v167
    %v506 = vunpack.c.l.b16 %v168
    %v507 = vunpack.c.h.b16 %v168
    %v508 = vunpack.c.l.b16 %v169
    %v509 = vunpack.c.h.b16 %v169
    %v510 = vunpack.c.l.b16 %v170
    %v511 = vunpack.c.h.b16 %v170
    %v512 = vunpack.c.l.b16 %v171
    %v513 = vunpack.c.h.b16 %v171
    %v514 = vunpack.c.l.b16 %v172
    %v515 = vunpack.c.h.b16 %v172
    %v516 = vunpack.c.l.b16 %v173
    %v517 = vunpack.c.h.b16 %v173
    %v518 = vunpack.c.l.b16 %v174
    %v519 = vunpack.c.h.b16 %v174
    %v520 = vunpack.c.l.b16 %v175
    %v521 = vunpack.c.h.b16 %v175
    %v522 = vunpack.c.l.b16 %v176
    %v523 = vunpack.c.h.b16 %v176
    %v524 = vunpack.c.l.b16 %v177
    %v525 = vunpack.c.h.b16 %v177
    %v526 = vunpack.c.l.b16 %v178
    %v527 = vunpack.c.h.b16 %v178
    %v528 = vunpack.c.l.b16 %v179
    %v529 = vunpack.c.h.b16 %v179
    %v530 = vunpack.c.l.b16 %v180
    %v531 = vunpack.c.h.b16 %v180
    %v532 = vunpack.c.l.b16 %v181
    %v533 = vunpack.c.h.b16 %v181
    %v534 = vunpack.c.l.b16 %v182
    %v535 = vunpack.c.h.b16 %v182
    %v536 = vunpack.c.l.b16 %v183
    %v537 = vunpack.c.h.b16 %v183
    %v538 = vunpack.c.l.b16 %v184
    %v539 = vunpack.c.h.b16 %v184
    %v540 = vunpack.c.l.b16 %v185
    %v541 = vunpack.c.h.b16 %v185
    %v542 = vunpack.c.l.b16 %v186
    %v543 = vunpack.c.h.b16 %v186
    %v544 = vunpack.c.l.b16 %v187
    %v545 = vunpack.c.h.b16 %v187
    %v546 = vunpack.c.l.b16 %v188
    %v547 = vunpack.c.h.b16 %v188
    %v548 = vunpack.c.l.b16 %v189
    %v549 = vunpack.c.h.b16 %v189
    %v550 = vunpack.c.l.b16 %v190
    %v551 = vunpack.c.h.b16 %v190
    %v552 = vunpack.c.l.b16 %v191
    %v553 = vunpack.c.h.b16 %v191
    %v554 = vunpack.c.l.b16 %v192
    %v555 = vunpack.c.h.b16 %v192
    %v556 = vunpack.c.l.b16 %v193
    %v557 = vunpack.c.h.b16 %v193
    %v558 = vunpack.c.l.b16 %v194
    %v559 = vunpack.c.h.b16 %v194
    %v560 = vunpack.c.l.b16 %v195
    %v561 = vunpack.c.h.b16 %v195
    %v562 = vunpack.c.l.b16 %v196
    %v563 = vunpack.c.h.b16 %v196
    %v564 = vunpack.c.l.b16 %v197
    %v565 = vunpack.c.h.b16 %v197
    %v566 = vunpack.c.l.b16 %v198
    %v567 = vunpack.c.h.b16 %v198
    %v568 = vunpack.c.l.b16 %v199
    %v569 = vunpack.c.h.b16 %v199
    %v570 = vunpack.c.l.b16 %v200
    %v571 = vunpack.c.h.b16 %v200
    %v572 = vunpack.c.l.b16 %v201
    %v573 = vunpack.c.h.b16 %v201
    %v574 = vunpack.c.l.b16 %v202
    %v575 = vunpack.c.h.b16 %v202
    %v576 = vunpack.c.l.b16 %v203
    %v577 = vunpack.c.h.b16 %v203
    %v578 = vunpack.c.l.b16 %v204
    %v579 = vunpack.c.h.b16 %v204
    %v580 = vunpack.c.l.b16 %v205
    %v581 = vunpack.c.h.b16 %v205
    %v582 = vunpack.c.l.b16 %v206
    %v583 = vunpack.c.h.b16 %v206
    %v584 = vunpack.c.l.b16 %v207
    %v585 = vunpack.c.h.b16 %v207
    %v586 = vunpack.c.l.b16 %v208
    %v587 = vunpack.c.h.b16 %v208
    %v588 = vunpack.c.l.b16 %v209
    %v589 = vunpack.c.h.b16 %v209
    %v590 = vunpack.c.l.b16 %v210
    %v591 = vunpack.c.h.b16 %v210
    %v592 = vunpack.c.l.b16 %v211
    %v593 = vunpack.c.h.b16 %v211
    %v594 = vunpack.c.l.b16 %v212
    %v595 = vunpack.c.h.b16 %v212
    %v596 = vunpack.c.l.b16 %v213
    %v597 = vunpack.c.h.b16 %v213
    %v598 = vpack.c.b16 %v376, %v374
    %v599 = vpack.c.b16 %v377, %v375
    %v600 = vpack.c.b16 %v380, %v378
    %v601 = vpack.c.b16 %v381, %v379
    %v602 = vpack.c.b16 %v384, %v382
    %v603 = vpack.c.b16 %v385, %v383
    %v604 = vpack.c.b16 %v388, %v386
    %v605 = vpack.c.b16 %v389, %v387
    %v606 = vpack.c.b16 %v392, %v390
    %v607 = vpack.c.b16 %v393, %v391
    %v608 = vpack.c.b16 %v396, %v394
    %v609 = vpack.c.b16 %v397, %v395
    %v610 = vpack.c.b16 %v400, %v398
    %v611 = vpack.c.b16 %v401, %v399
    %v612 = vpack.c.b16 %v404, %v402
    %v613 = vpack.c.b16 %v405, %v403
    %v614 = vpack.c.b16 %v408, %v406
    %v615 = vpack.c.b16 %v409, %v407
    %v616 = vpack.c.b16 %v412, %v410
    %v617 = vpack.c.b16 %v413, %v411
    %v618 = vpack.c.b16 %v416, %v414
    %v619 = vpack.c.b16 %v417, %v415
    %v620 = vpack.c.b16 %v420, %v418
    %v621 = vpack.c.b16 %v421, %v419
    %v622 = vpack.c.b16 %v424, %v422
    %v623 = vpack.c.b16 %v425, %v423
    %v624 = vpack.c.b16 %v428, %v426
    %v625 = vpack.c.b16 %v429, %v427
    %v626 = vpack.c.b16 %v432, %v430
    %v627 = vpack.c.b16 %v433, %v431
    %v628 = vpack.c.b16 %v436, %v434
    %v629 = vpack.c.b16 %v437, %v435
    %v630 = vpack.c.b16 %v440, %v438
    %v631 = vpack.c.b16 %v441, %v439
    %v632 = vpack.c.b16 %v444, %v442
    %v633 = vpack.c.b16 %v445, %v443
    %v634 = vpack.c.b16 %v448, %v446
    %v635 = vpack.c.b16 %v449, %v447
    %v636 = vpack.c.b16 %v452, %v450
    %v637 = vpack.c.b16 %v453, %v451
    %v638 = vpack.c.b16 %v456, %v454
    %v639 = vpack.c.b16 %v457, %v455
    %v640 = vpack.c.b16 %v460, %v458
    %v641 = vpack.c.b16 %v461, %v459
    %v642 = vpack.c.b16 %v464, %v462
    %v643 = vpack.c.b16 %v465, %v463
    %v644 = vpack.c.b16 %v468, %v466
    %v645 = vpack.c.b16 %v469, %v467
    %v646 = vpack.c.b16 %v472, %v470
    %v647 = vpack.c.b16 %v473, %v471
    %v648 = vpack.c.b16 %v476, %v474
    %v649 = vpack.c.b16 %v477, %v475
    %v650 = vpack.c.b16 %v480, %v478
    %v651 = vpack.c.b16 %v481, %v479
    %v652 = vpack.c.b16 %v484, %v482
    %v653 = vpack.c.b16 %v485, %v483
    %v654 = vpack.c.b16 %v488, %v486
    %v655 = vpack.c.b16 %v489, %v487
    %v656 = vpack.c.b16 %v492, %v490
    %v657 = vpack.c.b16 %v493, %v491
    %v658 = vpack.c.b16 %v496, %v494
    %v659 = vpack.c.b16 %v497, %v495
    %v660 = vpack.c.b16 %v500, %v498
    %v661 = vpack.c.b16 %v501, %v499
    %v662 = vpack.c.b16 %v504, %v502
    %v663 = vpack.c.b16 %v505, %v503
    %v664 = vpack.c.b16 %v508, %v506
    %v665 = vpack.c.b16 %v509, %v507
    %v666 = vpack.c.b16 %v512, %v510
    %v667 = vpack.c.b16 %v513, %v511
    %v668 = vpack.c.b16 %v516, %v514
    %v669 = vpack.c.b16 %v517, %v515
    %v670 = vpack.c.b16 %v520, %v518
    %v671 = vpack.c.b16 %v521, %v519
    %v672 = vpack.c.b16 %v524, %v522
    %v673 = vpack.c.b16 %v525, %v523
    %v674 = vpack.c.b16 %v528, %v526
    %v675 = vpack.c.b16 %v529, %v527
    %v676 = vpack.c.b16 %v532, %v530
    %v677 = vpack.c.b16 %v533, %v531
    %v678 = vpack.c.b16 %v536, %v534
    %v679 = vpack.c.b16 %v537, %v535
    %v680 = vpack.c.b16 %v540, %v538
    %v681 = vpack.c.b16 %v541, %v539
    %v682 = vpack.c.b16 %v544, %v542
    %v683 = vpack.c.b16 %v545, %v543
    %v684 = vpack.c.b16 %v548, %v546
    %v685 = vpack.c.b16 %v549, %v547
    %v686 = vpack.c.b16 %v552, %v550
    %v687 = vpack.c.b16 %v553, %v551
    %v688 = vpack.c.b16 %v556, %v554
    %v689 = vpack.c.b16 %v557, %v555
    %v690 = vpack.c.b16 %v560, %v558
    %v691 = vpack.c.b16 %v561, %v559
    %v692 = vpack.c.b16 %v564, %v562
    %v693 = vpack.c.b16 %v565, %v563
    %v694 = vpack.c.b16 %v568, %v566
    %v695 = vpack.c.b16 %v569, %v567
    %v696 = vpack.c.b16 %v572, %v570
    %v697 = vpack.c.b16 %v573, %v571
    %v698 = vpack.c.b16 %v576, %v574
    %v699 = vpack.c.b16 %v577, %v575
    %v700 = vpack.c.b16 %v580, %v578
    %v701 = vpack.c.b16 %v581, %v579
    %v702 = vpack.c.b16 %v584, %v582
    %v703 = vpack.c.b16 %v585, %v583
    %v704 = vpack.c.b16 %v588, %v586
    %v705 = vpack.c.b16 %v589, %v587
    %v706 = vpack.c.b16 %v592, %v590
    %v707 = vpack.c.b16 %v593, %v591
    %v708 = vpack.c.b16 %v596, %v594
    %v709 = vpack.c.b16 %v597, %v595
    %822 = vmatprep.subr.bf16.mxu0 %v599
    %823 = vmatpush1.bf16.msra.mxu0 %v598
    %824 = vmatprep.subr.bf16.mxu0 %v601
    %825 = vmatpush1.bf16.msra.mxu0 %v600
    %826 = vmatprep.subr.bf16.mxu0 %v603
    %827 = vmatpush1.bf16.msra.mxu0 %v602
    %828 = vmatprep.subr.bf16.mxu0 %v605
    %829 = vmatpush1.bf16.msra.mxu0 %v604
    %830 = vmatprep.subr.bf16.mxu0 %v607
    %831 = vmatpush1.bf16.msra.mxu0 %v606
    %832 = vmatprep.subr.bf16.mxu0 %v609
    %833 = vmatpush1.bf16.msra.mxu0 %v608
    %834 = vmatprep.subr.bf16.mxu0 %v611
    %835 = vmatpush1.bf16.msra.mxu0 %v610
    %836 = vmatprep.subr.bf16.mxu0 %v613
    %837 = vmatpush1.bf16.msra.mxu0 %v612
    %838 = vmatprep.subr.bf16.mxu0 %v615
    %839 = vmatpush1.bf16.msra.mxu0 %v614
    %840 = vmatprep.subr.bf16.mxu0 %v617
    %841 = vmatpush1.bf16.msra.mxu0 %v616
    %842 = vmatprep.subr.bf16.mxu0 %v619
    %843 = vmatpush1.bf16.msra.mxu0 %v618
    %844 = vmatprep.subr.bf16.mxu0 %v621
    %845 = vmatpush1.bf16.msra.mxu0 %v620
    %846 = vmatprep.subr.bf16.mxu0 %v623
    %847 = vmatpush1.bf16.msra.mxu0 %v622
    %848 = vmatprep.subr.bf16.mxu0 %v625
    %849 = vmatpush1.bf16.msra.mxu0 %v624
    %850 = vmatprep.subr.bf16.mxu0 %v627
    %851 = vmatpush1.bf16.msra.mxu0 %v626
    %852 = vmatprep.subr.bf16.mxu0 %v629
    %853 = vmatpush1.bf16.msra.mxu0 %v628
    %854 = vmatprep.mubr.bf16.mxu0 %v249
    %855 = vmatmul.mubr.bf16.gmra.mrb[0].mxu0 %v248
    %v856 = vpop.f32.mrb[0].mxu0
    %v857 = vadd.f32 %v219, %v856
    %v858 = vpop.f32.mrb[0].mxu0
    %v859 = vadd.f32 %v223, %v858
    %v860 = vpop.f32.mrb[0].mxu0
    %v861 = vadd.f32 %v219, %v860
    %v862 = vpop.f32.mrb[0].mxu0
    %v863 = vadd.f32 %v223, %v862
    %864 = vdwg.mxu0
    %865 = vmatprep.subr.bf16.mxu0 %v631
    %866 = vmatpush1.bf16.msra.mxu0 %v630
    %867 = vmatprep.subr.bf16.mxu0 %v633
    %868 = vmatpush1.bf16.msra.mxu0 %v632
    %869 = vmatprep.subr.bf16.mxu0 %v635
    %870 = vmatpush1.bf16.msra.mxu0 %v634
    %871 = vmatprep.subr.bf16.mxu0 %v637
    %872 = vmatpush1.bf16.msra.mxu0 %v636
    %873 = vmatprep.subr.bf16.mxu0 %v639
    %874 = vmatpush1.bf16.msra.mxu0 %v638
    %875 = vmatprep.subr.bf16.mxu0 %v641
    %876 = vmatpush1.bf16.msra.mxu0 %v640
    %877 = vmatprep.subr.bf16.mxu0 %v643
    %878 = vmatpush1.bf16.msra.mxu0 %v642
    %879 = vmatprep.subr.bf16.mxu0 %v645
    %880 = vmatpush1.bf16.msra.mxu0 %v644
    %881 = vmatprep.subr.bf16.mxu0 %v647
    %882 = vmatpush1.bf16.msra.mxu0 %v646
    %883 = vmatprep.subr.bf16.mxu0 %v649
    %884 = vmatpush1.bf16.msra.mxu0 %v648
    %885 = vmatprep.subr.bf16.mxu0 %v651
    %886 = vmatpush1.bf16.msra.mxu0 %v650
    %887 = vmatprep.subr.bf16.mxu0 %v653
    %888 = vmatpush1.bf16.msra.mxu0 %v652
    %889 = vmatprep.subr.bf16.mxu0 %v655
    %890 = vmatpush1.bf16.msra.mxu0 %v654
    %891 = vmatprep.subr.bf16.mxu0 %v657
    %892 = vmatpush1.bf16.msra.mxu0 %v656
    %893 = vmatprep.subr.bf16.mxu0 %v659
    %894 = vmatpush1.bf16.msra.mxu0 %v658
    %895 = vmatprep.subr.bf16.mxu0 %v661
    %896 = vmatpush1.bf16.msra.mxu0 %v660
    %897 = vmatprep.mubr.bf16.mxu0 %v251
    %898 = vmatmul.mubr.bf16.gmra.mrb[0].mxu0 %v250
    %v899 = vpop.f32.mrb[0].mxu0
    %v900 = vadd.f32 %v857, %v899
    %v901 = vpop.f32.mrb[0].mxu0
    %v902 = vadd.f32 %v859, %v901
    %v903 = vpop.f32.mrb[0].mxu0
    %v904 = vadd.f32 %v861, %v903
    %v905 = vpop.f32.mrb[0].mxu0
    %v906 = vadd.f32 %v863, %v905
    %907 = vdwg.mxu0
    %908 = vmatprep.subr.bf16.mxu0 %v663
    %909 = vmatpush1.bf16.msra.mxu0 %v662
    %910 = vmatprep.subr.bf16.mxu0 %v665
    %911 = vmatpush1.bf16.msra.mxu0 %v664
    %912 = vmatprep.subr.bf16.mxu0 %v667
    %913 = vmatpush1.bf16.msra.mxu0 %v666
    %914 = vmatprep.subr.bf16.mxu0 %v669
    %915 = vmatpush1.bf16.msra.mxu0 %v668
    %916 = vmatprep.subr.bf16.mxu0 %v671
    %917 = vmatpush1.bf16.msra.mxu0 %v670
    %918 = vmatprep.subr.bf16.mxu0 %v673
    %919 = vmatpush1.bf16.msra.mxu0 %v672
    %920 = vmatprep.subr.bf16.mxu0 %v675
    %921 = vmatpush1.bf16.msra.mxu0 %v674
    %922 = vmatprep.subr.bf16.mxu0 %v677
    %923 = vmatpush1.bf16.msra.mxu0 %v676
    %924 = vmatprep.subr.bf16.mxu0 %v679
    %925 = vmatpush1.bf16.msra.mxu0 %v678
    %926 = vmatprep.subr.bf16.mxu0 %v681
    %927 = vmatpush1.bf16.msra.mxu0 %v680
    %928 = vmatprep.subr.bf16.mxu0 %v683
    %929 = vmatpush1.bf16.msra.mxu0 %v682
    %930 = vmatprep.subr.bf16.mxu0 %v685
    %931 = vmatpush1.bf16.msra.mxu0 %v684
    %932 = vmatprep.subr.bf16.mxu0 %v687
    %933 = vmatpush1.bf16.msra.mxu0 %v686
    %934 = vmatprep.subr.bf16.mxu0 %v689
    %935 = vmatpush1.bf16.msra.mxu0 %v688
    %936 = vmatprep.subr.bf16.mxu0 %v691
    %937 = vmatpush1.bf16.msra.mxu0 %v690
    %938 = vmatprep.subr.bf16.mxu0 %v693
    %939 = vmatpush1.bf16.msra.mxu0 %v692
    %940 = vmatprep.mubr.bf16.mxu0 %v253
    %941 = vmatmul.mubr.bf16.gmra.mrb[0].mxu0 %v252
    %v942 = vpop.f32.mrb[0].mxu0
    %v943 = vadd.f32 %v900, %v942
    %v944 = vpop.f32.mrb[0].mxu0
    %v945 = vadd.f32 %v902, %v944
    %v946 = vpop.f32.mrb[0].mxu0
    %v947 = vadd.f32 %v904, %v946
    %v948 = vpop.f32.mrb[0].mxu0
    %v949 = vadd.f32 %v906, %v948
    %950 = vdwg.mxu0
    %951 = vmatprep.subr.bf16.mxu0 %v695
    %952 = vmatpush1.bf16.msra.mxu0 %v694
    %953 = vmatprep.subr.bf16.mxu0 %v697
    %954 = vmatpush1.bf16.msra.mxu0 %v696
    %955 = vmatprep.subr.bf16.mxu0 %v699
    %956 = vmatpush1.bf16.msra.mxu0 %v698
    %957 = vmatprep.subr.bf16.mxu0 %v701
    %958 = vmatpush1.bf16.msra.mxu0 %v700
    %959 = vmatprep.subr.bf16.mxu0 %v703
    %960 = vmatpush1.bf16.msra.mxu0 %v702
    %961 = vmatprep.subr.bf16.mxu0 %v705
    %962 = vmatpush1.bf16.msra.mxu0 %v704
    %963 = vmatprep.subr.bf16.mxu0 %v707
    %964 = vmatpush1.bf16.msra.mxu0 %v706
    %965 = vmatprep.subr.bf16.mxu0 %v709
    %966 = vmatpush1.bf16.msra.mxu0 %v708
    %967 = vmatprep.subr.bf16.mxu0 0
    %968 = vmatpush1.bf16.msra.mxu0 0
    %969 = vmatprep.subr.bf16.mxu0 0
    %970 = vmatpush1.bf16.msra.mxu0 0
    %971 = vmatprep.subr.bf16.mxu0 0
    %972 = vmatpush1.bf16.msra.mxu0 0
    %973 = vmatprep.subr.bf16.mxu0 0
    %974 = vmatpush1.bf16.msra.mxu0 0
    %975 = vmatprep.subr.bf16.mxu0 0
    %976 = vmatpush1.bf16.msra.mxu0 0
    %977 = vmatprep.subr.bf16.mxu0 0
    %978 = vmatpush1.bf16.msra.mxu0 0
    %979 = vmatprep.subr.bf16.mxu0 0
    %980 = vmatpush1.bf16.msra.mxu0 0
    %981 = vmatprep.subr.bf16.mxu0 0
    %982 = vmatpush1.bf16.msra.mxu0 0
    %983 = vmatprep.mubr.bf16.mxu0 0
    %984 = vmatmul.mubr.bf16.gmra.mrb[0].mxu0 %v254
    %v985 = vpop.f32.mrb[0].mxu0
    %v986 = vadd.f32 %v943, %v985
    %v987 = vpop.f32.mrb[0].mxu0
    %v988 = vadd.f32 %v945, %v987
    %v989 = vpop.f32.mrb[0].mxu0
    %v990 = vadd.f32 %v947, %v989
    %v991 = vpop.f32.mrb[0].mxu0
    %v992 = vadd.f32 %v949, %v991
    %993 = vdwg.mxu0
    %v994 = vmax.f32 %v986, 0.0
    %v995 = vmax.f32 %v988, 0.0
    %v996 = vmax.f32 %v990, 0.0
    %v997 = vmax.f32 %v992, 0.0
    %v998 = vpack.c.bf16 %v996, %v994
    %v999 = vpack.c.bf16 %v997, %v995
    %v1000 = vld [vmem:[#allocation4] sm:$0xff]
    %v1001 = vld [vmem:[#allocation4 + $0x8] sm:$0xff]
    %v1002 = vld [vmem:[#allocation4 + $0x10] sm:$0xff]
    %v1003 = vld [vmem:[#allocation4 + $0x18] sm:$0xff]
    %v1004 = vld [vmem:[#allocation4 + $0x20] sm:$0xff]
    %v1005 = vld [vmem:[#allocation4 + $0x28] sm:$0xff]
    %v1006 = vld [vmem:[#allocation4 + $0x30] sm:$0xff]
    %v1007 = vld [vmem:[#allocation4 + $0x38] sm:$0xff]
    %v1008 = vld [vmem:[#allocation4 + $0x40] sm:$0xff]
    %v1009 = vld [vmem:[#allocation4 + $0x48] sm:$0xff]
    %v1010 = vld [vmem:[#allocation4 + $0x50] sm:$0xff]
    %v1011 = vld [vmem:[#allocation4 + $0x58] sm:$0xff]
    %v1012 = vld [vmem:[#allocation4 + $0x60] sm:$0xff]
    %v1013 = vld [vmem:[#allocation4 + $0x68] sm:$0xff]
    %v1014 = vld [vmem:[#allocation4 + $0x70] sm:$0xff]
    %v1015 = vld [vmem:[#allocation4 + $0x78] sm:$0xff]
    %v1016 = vld [vmem:[#allocation4 + $0x80] sm:$0xff]
    %v1017 = vld [vmem:[#allocation4 + $0x88] sm:$0xff]
    %v1018 = vld [vmem:[#allocation4 + $0x90] sm:$0xff]
    %v1019 = vld [vmem:[#allocation4 + $0x98] sm:$0xff]
    %v1020 = vld [vmem:[#allocation4 + $0xa0] sm:$0xff]
    %v1021 = vld [vmem:[#allocation4 + $0xa8] sm:$0xff]
    %v1022 = vld [vmem:[#allocation4 + $0xb0] sm:$0xff]
    %v1023 = vld [vmem:[#allocation4 + $0xb8] sm:$0xff]
    %v1024 = vld [vmem:[#allocation4 + $0xc0] sm:$0xff]
    %v1025 = vld [vmem:[#allocation4 + $0xc8] sm:$0xff]
    %v1026 = vld [vmem:[#allocation4 + $0xd0] sm:$0xff]
    %v1027 = vld [vmem:[#allocation4 + $0xd8] sm:$0xff]
    %v1028 = vld [vmem:[#allocation4 + $0xe0] sm:$0xff]
    %v1029 = vld [vmem:[#allocation4 + $0xe8] sm:$0xff]
    %v1030 = vld [vmem:[#allocation4 + $0xf0] sm:$0xff]
    %v1031 = vld [vmem:[#allocation4 + $0xf8] sm:$0xff]
    %v1032 = vld [vmem:[%s4] sm:$0x3]
    %v1034 = vlaneseq
    %v1035 = vshrl.u32 %v1034, 7
    %v1036 = vsub.s32 0, %v1035
    %v1037 = vrot.slane %v1032, %v1036
    %v1038 = vlaneseq
    %v1039 = vshrl.u32 %v1038, 7
    %v1040 = vsub.s32 1, %v1039
    %v1041 = vrot.slane %v1032, %v1040
    %v1076 = vunpack.c.l.b16 %v1000
    %v1077 = vunpack.c.h.b16 %v1000
    %v1078 = vunpack.c.l.b16 %v1001
    %v1079 = vunpack.c.h.b16 %v1001
    %v1080 = vunpack.c.l.b16 %v1002
    %v1081 = vunpack.c.h.b16 %v1002
    %v1082 = vunpack.c.l.b16 %v1003
    %v1083 = vunpack.c.h.b16 %v1003
    %v1084 = vunpack.c.l.b16 %v1004
    %v1085 = vunpack.c.h.b16 %v1004
    %v1086 = vunpack.c.l.b16 %v1005
    %v1087 = vunpack.c.h.b16 %v1005
    %v1088 = vunpack.c.l.b16 %v1006
    %v1089 = vunpack.c.h.b16 %v1006
    %v1090 = vunpack.c.l.b16 %v1007
    %v1091 = vunpack.c.h.b16 %v1007
    %v1092 = vunpack.c.l.b16 %v1008
    %v1093 = vunpack.c.h.b16 %v1008
    %v1094 = vunpack.c.l.b16 %v1009
    %v1095 = vunpack.c.h.b16 %v1009
    %v1096 = vunpack.c.l.b16 %v1010
    %v1097 = vunpack.c.h.b16 %v1010
    %v1098 = vunpack.c.l.b16 %v1011
    %v1099 = vunpack.c.h.b16 %v1011
    %v1100 = vunpack.c.l.b16 %v1012
    %v1101 = vunpack.c.h.b16 %v1012
    %v1102 = vunpack.c.l.b16 %v1013
    %v1103 = vunpack.c.h.b16 %v1013
    %v1104 = vunpack.c.l.b16 %v1014
    %v1105 = vunpack.c.h.b16 %v1014
    %v1106 = vunpack.c.l.b16 %v1015
    %v1107 = vunpack.c.h.b16 %v1015
    %v1108 = vunpack.c.l.b16 %v1016
    %v1109 = vunpack.c.h.b16 %v1016
    %v1110 = vunpack.c.l.b16 %v1017
    %v1111 = vunpack.c.h.b16 %v1017
    %v1112 = vunpack.c.l.b16 %v1018
    %v1113 = vunpack.c.h.b16 %v1018
    %v1114 = vunpack.c.l.b16 %v1019
    %v1115 = vunpack.c.h.b16 %v1019
    %v1116 = vunpack.c.l.b16 %v1020
    %v1117 = vunpack.c.h.b16 %v1020
    %v1118 = vunpack.c.l.b16 %v1021
    %v1119 = vunpack.c.h.b16 %v1021
    %v1120 = vunpack.c.l.b16 %v1022
    %v1121 = vunpack.c.h.b16 %v1022
    %v1122 = vunpack.c.l.b16 %v1023
    %v1123 = vunpack.c.h.b16 %v1023
    %v1124 = vunpack.c.l.b16 %v1024
    %v1125 = vunpack.c.h.b16 %v1024
    %v1126 = vunpack.c.l.b16 %v1025
    %v1127 = vunpack.c.h.b16 %v1025
    %v1128 = vunpack.c.l.b16 %v1026
    %v1129 = vunpack.c.h.b16 %v1026
    %v1130 = vunpack.c.l.b16 %v1027
    %v1131 = vunpack.c.h.b16 %v1027
    %v1132 = vunpack.c.l.b16 %v1028
    %v1133 = vunpack.c.h.b16 %v1028
    %v1134 = vunpack.c.l.b16 %v1029
    %v1135 = vunpack.c.h.b16 %v1029
    %v1136 = vunpack.c.l.b16 %v1030
    %v1137 = vunpack.c.h.b16 %v1030
    %v1138 = vunpack.c.l.b16 %v1031
    %v1139 = vunpack.c.h.b16 %v1031
    %v1140 = vpack.c.b16 %v1078, %v1076
    %v1141 = vpack.c.b16 %v1079, %v1077
    %v1142 = vpack.c.b16 %v1082, %v1080
    %v1143 = vpack.c.b16 %v1083, %v1081
    %v1144 = vpack.c.b16 %v1086, %v1084
    %v1145 = vpack.c.b16 %v1087, %v1085
    %v1146 = vpack.c.b16 %v1090, %v1088
    %v1147 = vpack.c.b16 %v1091, %v1089
    %v1148 = vpack.c.b16 %v1094, %v1092
    %v1149 = vpack.c.b16 %v1095, %v1093
    %v1150 = vpack.c.b16 %v1098, %v1096
    %v1151 = vpack.c.b16 %v1099, %v1097
    %v1152 = vpack.c.b16 %v1102, %v1100
    %v1153 = vpack.c.b16 %v1103, %v1101
    %v1154 = vpack.c.b16 %v1106, %v1104
    %v1155 = vpack.c.b16 %v1107, %v1105
    %v1156 = vpack.c.b16 %v1110, %v1108
    %v1157 = vpack.c.b16 %v1111, %v1109
    %v1158 = vpack.c.b16 %v1114, %v1112
    %v1159 = vpack.c.b16 %v1115, %v1113
    %v1160 = vpack.c.b16 %v1118, %v1116
    %v1161 = vpack.c.b16 %v1119, %v1117
    %v1162 = vpack.c.b16 %v1122, %v1120
    %v1163 = vpack.c.b16 %v1123, %v1121
    %v1164 = vpack.c.b16 %v1126, %v1124
    %v1165 = vpack.c.b16 %v1127, %v1125
    %v1166 = vpack.c.b16 %v1130, %v1128
    %v1167 = vpack.c.b16 %v1131, %v1129
    %v1168 = vpack.c.b16 %v1134, %v1132
    %v1169 = vpack.c.b16 %v1135, %v1133
    %v1170 = vpack.c.b16 %v1138, %v1136
    %v1171 = vpack.c.b16 %v1139, %v1137
    %1204 = vmatprep.subr.bf16.mxu0 %v1141
    %1205 = vmatpush1.bf16.msra.mxu0 %v1140
    %1206 = vmatprep.subr.bf16.mxu0 %v1143
    %1207 = vmatpush1.bf16.msra.mxu0 %v1142
    %1208 = vmatprep.subr.bf16.mxu0 %v1145
    %1209 = vmatpush1.bf16.msra.mxu0 %v1144
    %1210 = vmatprep.subr.bf16.mxu0 %v1147
    %1211 = vmatpush1.bf16.msra.mxu0 %v1146
    %1212 = vmatprep.subr.bf16.mxu0 %v1149
    %1213 = vmatpush1.bf16.msra.mxu0 %v1148
    %1214 = vmatprep.subr.bf16.mxu0 %v1151
    %1215 = vmatpush1.bf16.msra.mxu0 %v1150
    %1216 = vmatprep.subr.bf16.mxu0 %v1153
    %1217 = vmatpush1.bf16.msra.mxu0 %v1152
    %1218 = vmatprep.subr.bf16.mxu0 %v1155
    %1219 = vmatpush1.bf16.msra.mxu0 %v1154
    %1220 = vmatprep.subr.bf16.mxu0 %v1157
    %1221 = vmatpush1.bf16.msra.mxu0 %v1156
    %1222 = vmatprep.subr.bf16.mxu0 %v1159
    %1223 = vmatpush1.bf16.msra.mxu0 %v1158
    %1224 = vmatprep.subr.bf16.mxu0 %v1161
    %1225 = vmatpush1.bf16.msra.mxu0 %v1160
    %1226 = vmatprep.subr.bf16.mxu0 %v1163
    %1227 = vmatpush1.bf16.msra.mxu0 %v1162
    %1228 = vmatprep.subr.bf16.mxu0 %v1165
    %1229 = vmatpush1.bf16.msra.mxu0 %v1164
    %1230 = vmatprep.subr.bf16.mxu0 %v1167
    %1231 = vmatpush1.bf16.msra.mxu0 %v1166
    %1232 = vmatprep.subr.bf16.mxu0 %v1169
    %1233 = vmatpush1.bf16.msra.mxu0 %v1168
    %1234 = vmatprep.subr.bf16.mxu0 %v1171
    %1235 = vmatpush1.bf16.msra.mxu0 %v1170
    %1236 = vmatprep.mubr.bf16.mxu0 %v999
    %1237 = vmatmul.mubr.bf16.gmra.mrb[0].mxu0 %v998
    %v1238 = vpop.f32.mrb[0].mxu0
    %v1239 = vadd.f32 %v1037, %v1238
    %v1240 = vpop.f32.mrb[0].mxu0
    %v1241 = vadd.f32 %v1041, %v1240
    %v1242 = vpop.f32.mrb[0].mxu0
    %v1243 = vadd.f32 %v1037, %v1242
    %v1244 = vpop.f32.mrb[0].mxu0
    %v1245 = vadd.f32 %v1041, %v1244
    %1246 = vdwg.mxu0
    %v1247 = vmax.f32 %v1239, 0.0
    %v1248 = vmax.f32 %v1241, 0.0
    %v1249 = vmax.f32 %v1243, 0.0
    %v1250 = vmax.f32 %v1245, 0.0
    %v1251 = vpack.c.bf16 %v1249, %v1247
    %v1252 = vpack.c.bf16 %v1250, %v1248
    %v1253 = vld [vmem:[#allocation6] sm:$0xff]
    %v1254 = vld [vmem:[#allocation6 + $0x8] sm:$0xff]
    %v1255 = vld [vmem:[#allocation6 + $0x10] sm:$0xff]
    %v1256 = vld [vmem:[#allocation6 + $0x18] sm:$0xff]
    %v1257 = vld [vmem:[#allocation6 + $0x20] sm:$0xff]
    %v1258 = vld [vmem:[#allocation6 + $0x28] sm:$0xff]
    %v1259 = vld [vmem:[#allocation6 + $0x30] sm:$0xff]
    %v1260 = vld [vmem:[#allocation6 + $0x38] sm:$0xff]
    %v1261 = vld [vmem:[#allocation6 + $0x40] sm:$0xff]
    %v1262 = vld [vmem:[#allocation6 + $0x48] sm:$0xff]
    %v1263 = vld [vmem:[#allocation6 + $0x50] sm:$0xff]
    %v1264 = vld [vmem:[#allocation6 + $0x58] sm:$0xff]
    %v1265 = vld [vmem:[#allocation6 + $0x60] sm:$0xff]
    %v1266 = vld [vmem:[#allocation6 + $0x68] sm:$0xff]
    %v1267 = vld [vmem:[#allocation6 + $0x70] sm:$0xff]
    %v1268 = vld [vmem:[#allocation6 + $0x78] sm:$0xff]
    %v1269 = vld [vmem:[#allocation6 + $0x80] sm:$0xff]
    %v1270 = vld [vmem:[#allocation6 + $0x88] sm:$0xff]
    %v1271 = vld [vmem:[#allocation6 + $0x90] sm:$0xff]
    %v1272 = vld [vmem:[#allocation6 + $0x98] sm:$0xff]
    %v1273 = vld [vmem:[#allocation6 + $0xa0] sm:$0xff]
    %v1274 = vld [vmem:[#allocation6 + $0xa8] sm:$0xff]
    %v1275 = vld [vmem:[#allocation6 + $0xb0] sm:$0xff]
    %v1276 = vld [vmem:[#allocation6 + $0xb8] sm:$0xff]
    %v1277 = vld [vmem:[#allocation6 + $0xc0] sm:$0xff]
    %v1278 = vld [vmem:[#allocation6 + $0xc8] sm:$0xff]
    %v1279 = vld [vmem:[#allocation6 + $0xd0] sm:$0xff]
    %v1280 = vld [vmem:[#allocation6 + $0xd8] sm:$0xff]
    %v1281 = vld [vmem:[#allocation6 + $0xe0] sm:$0xff]
    %v1282 = vld [vmem:[#allocation6 + $0xe8] sm:$0xff]
    %v1283 = vld [vmem:[#allocation6 + $0xf0] sm:$0xff]
    %v1284 = vld [vmem:[#allocation6 + $0xf8] sm:$0xff]
    %v1285 = vld [vmem:[%s6] sm:$0x3]
    %v1287 = vlaneseq
    %v1288 = vshrl.u32 %v1287, 7
    %v1289 = vsub.s32 0, %v1288
    %v1290 = vrot.slane %v1285, %v1289
    %v1291 = vlaneseq
    %v1292 = vshrl.u32 %v1291, 7
    %v1293 = vsub.s32 1, %v1292
    %v1294 = vrot.slane %v1285, %v1293
    %v1329 = vunpack.c.l.b16 %v1253
    %v1330 = vunpack.c.h.b16 %v1253
    %v1331 = vunpack.c.l.b16 %v1254
    %v1332 = vunpack.c.h.b16 %v1254
    %v1333 = vunpack.c.l.b16 %v1255
    %v1334 = vunpack.c.h.b16 %v1255
    %v1335 = vunpack.c.l.b16 %v1256
    %v1336 = vunpack.c.h.b16 %v1256
    %v1337 = vunpack.c.l.b16 %v1257
    %v1338 = vunpack.c.h.b16 %v1257
    %v1339 = vunpack.c.l.b16 %v1258
    %v1340 = vunpack.c.h.b16 %v1258
    %v1341 = vunpack.c.l.b16 %v1259
    %v1342 = vunpack.c.h.b16 %v1259
    %v1343 = vunpack.c.l.b16 %v1260
    %v1344 = vunpack.c.h.b16 %v1260
    %v1345 = vunpack.c.l.b16 %v1261
    %v1346 = vunpack.c.h.b16 %v1261
    %v1347 = vunpack.c.l.b16 %v1262
    %v1348 = vunpack.c.h.b16 %v1262
    %v1349 = vunpack.c.l.b16 %v1263
    %v1350 = vunpack.c.h.b16 %v1263
    %v1351 = vunpack.c.l.b16 %v1264
    %v1352 = vunpack.c.h.b16 %v1264
    %v1353 = vunpack.c.l.b16 %v1265
    %v1354 = vunpack.c.h.b16 %v1265
    %v1355 = vunpack.c.l.b16 %v1266
    %v1356 = vunpack.c.h.b16 %v1266
    %v1357 = vunpack.c.l.b16 %v1267
    %v1358 = vunpack.c.h.b16 %v1267
    %v1359 = vunpack.c.l.b16 %v1268
    %v1360 = vunpack.c.h.b16 %v1268
    %v1361 = vunpack.c.l.b16 %v1269
    %v1362 = vunpack.c.h.b16 %v1269
    %v1363 = vunpack.c.l.b16 %v1270
    %v1364 = vunpack.c.h.b16 %v1270
    %v1365 = vunpack.c.l.b16 %v1271
    %v1366 = vunpack.c.h.b16 %v1271
    %v1367 = vunpack.c.l.b16 %v1272
    %v1368 = vunpack.c.h.b16 %v1272
    %v1369 = vunpack.c.l.b16 %v1273
    %v1370 = vunpack.c.h.b16 %v1273
    %v1371 = vunpack.c.l.b16 %v1274
    %v1372 = vunpack.c.h.b16 %v1274
    %v1373 = vunpack.c.l.b16 %v1275
    %v1374 = vunpack.c.h.b16 %v1275
    %v1375 = vunpack.c.l.b16 %v1276
    %v1376 = vunpack.c.h.b16 %v1276
    %v1377 = vunpack.c.l.b16 %v1277
    %v1378 = vunpack.c.h.b16 %v1277
    %v1379 = vunpack.c.l.b16 %v1278
    %v1380 = vunpack.c.h.b16 %v1278
    %v1381 = vunpack.c.l.b16 %v1279
    %v1382 = vunpack.c.h.b16 %v1279
    %v1383 = vunpack.c.l.b16 %v1280
    %v1384 = vunpack.c.h.b16 %v1280
    %v1385 = vunpack.c.l.b16 %v1281
    %v1386 = vunpack.c.h.b16 %v1281
    %v1387 = vunpack.c.l.b16 %v1282
    %v1388 = vunpack.c.h.b16 %v1282
    %v1389 = vunpack.c.l.b16 %v1283
    %v1390 = vunpack.c.h.b16 %v1283
    %v1391 = vunpack.c.l.b16 %v1284
    %v1392 = vunpack.c.h.b16 %v1284
    %v1393 = vpack.c.b16 %v1331, %v1329
    %v1394 = vpack.c.b16 %v1332, %v1330
    %v1395 = vpack.c.b16 %v1335, %v1333
    %v1396 = vpack.c.b16 %v1336, %v1334
    %v1397 = vpack.c.b16 %v1339, %v1337
    %v1398 = vpack.c.b16 %v1340, %v1338
    %v1399 = vpack.c.b16 %v1343, %v1341
    %v1400 = vpack.c.b16 %v1344, %v1342
    %v1401 = vpack.c.b16 %v1347, %v1345
    %v1402 = vpack.c.b16 %v1348, %v1346
    %v1403 = vpack.c.b16 %v1351, %v1349
    %v1404 = vpack.c.b16 %v1352, %v1350
    %v1405 = vpack.c.b16 %v1355, %v1353
    %v1406 = vpack.c.b16 %v1356, %v1354
    %v1407 = vpack.c.b16 %v1359, %v1357
    %v1408 = vpack.c.b16 %v1360, %v1358
    %v1409 = vpack.c.b16 %v1363, %v1361
    %v1410 = vpack.c.b16 %v1364, %v1362
    %v1411 = vpack.c.b16 %v1367, %v1365
    %v1412 = vpack.c.b16 %v1368, %v1366
    %v1413 = vpack.c.b16 %v1371, %v1369
    %v1414 = vpack.c.b16 %v1372, %v1370
    %v1415 = vpack.c.b16 %v1375, %v1373
    %v1416 = vpack.c.b16 %v1376, %v1374
    %v1417 = vpack.c.b16 %v1379, %v1377
    %v1418 = vpack.c.b16 %v1380, %v1378
    %v1419 = vpack.c.b16 %v1383, %v1381
    %v1420 = vpack.c.b16 %v1384, %v1382
    %v1421 = vpack.c.b16 %v1387, %v1385
    %v1422 = vpack.c.b16 %v1388, %v1386
    %v1423 = vpack.c.b16 %v1391, %v1389
    %v1424 = vpack.c.b16 %v1392, %v1390
    %1457 = vmatprep.subr.bf16.mxu0 %v1394
    %1458 = vmatpush1.bf16.msra.mxu0 %v1393
    %1459 = vmatprep.subr.bf16.mxu0 %v1396
    %1460 = vmatpush1.bf16.msra.mxu0 %v1395
    %1461 = vmatprep.subr.bf16.mxu0 %v1398
    %1462 = vmatpush1.bf16.msra.mxu0 %v1397
    %1463 = vmatprep.subr.bf16.mxu0 %v1400
    %1464 = vmatpush1.bf16.msra.mxu0 %v1399
    %1465 = vmatprep.subr.bf16.mxu0 %v1402
    %1466 = vmatpush1.bf16.msra.mxu0 %v1401
    %1467 = vmatprep.subr.bf16.mxu0 %v1404
    %1468 = vmatpush1.bf16.msra.mxu0 %v1403
    %1469 = vmatprep.subr.bf16.mxu0 %v1406
    %1470 = vmatpush1.bf16.msra.mxu0 %v1405
    %1471 = vmatprep.subr.bf16.mxu0 %v1408
    %1472 = vmatpush1.bf16.msra.mxu0 %v1407
    %1473 = vmatprep.subr.bf16.mxu0 %v1410
    %1474 = vmatpush1.bf16.msra.mxu0 %v1409
    %1475 = vmatprep.subr.bf16.mxu0 %v1412
    %1476 = vmatpush1.bf16.msra.mxu0 %v1411
    %1477 = vmatprep.subr.bf16.mxu0 %v1414
    %1478 = vmatpush1.bf16.msra.mxu0 %v1413
    %1479 = vmatprep.subr.bf16.mxu0 %v1416
    %1480 = vmatpush1.bf16.msra.mxu0 %v1415
    %1481 = vmatprep.subr.bf16.mxu0 %v1418
    %1482 = vmatpush1.bf16.msra.mxu0 %v1417
    %1483 = vmatprep.subr.bf16.mxu0 %v1420
    %1484 = vmatpush1.bf16.msra.mxu0 %v1419
    %1485 = vmatprep.subr.bf16.mxu0 %v1422
    %1486 = vmatpush1.bf16.msra.mxu0 %v1421
    %1487 = vmatprep.subr.bf16.mxu0 %v1424
    %1488 = vmatpush1.bf16.msra.mxu0 %v1423
    %1489 = vmatprep.mubr.bf16.mxu0 %v1252
    %1490 = vmatmul.mubr.bf16.gmra.mrb[0].mxu0 %v1251
    %v1491 = vpop.f32.mrb[0].mxu0
    %v1492 = vadd.f32 %v1290, %v1491
    %v1493 = vpop.f32.mrb[0].mxu0
    %v1494 = vadd.f32 %v1294, %v1493
    %v1495 = vpop.f32.mrb[0].mxu0
    %v1496 = vadd.f32 %v1290, %v1495
    %v1497 = vpop.f32.mrb[0].mxu0
    %v1498 = vadd.f32 %v1294, %v1497
    %1499 = vdwg.mxu0
    %v1500 = vmax.f32 %v1492, 0.0
    %v1501 = vmax.f32 %v1494, 0.0
    %v1502 = vmax.f32 %v1496, 0.0
    %v1503 = vmax.f32 %v1498, 0.0
    %v1504 = vpack.c.bf16 %v1502, %v1500
    %v1505 = vpack.c.bf16 %v1503, %v1501
    %v1506 = vld [vmem:[#allocation7] sm:$0xff]
    %v1507 = vld [vmem:[#allocation7 + $0x8] sm:$0xff]
    %v1508 = vld [vmem:[#allocation7 + $0x10] sm:$0xff]
    %v1509 = vld [vmem:[#allocation7 + $0x18] sm:$0xff]
    %v1510 = vld [vmem:[#allocation7 + $0x20] sm:$0xff]
    %v1511 = vld [vmem:[#allocation7 + $0x28] sm:$0xff]
    %v1512 = vld [vmem:[#allocation7 + $0x30] sm:$0xff]
    %v1513 = vld [vmem:[#allocation7 + $0x38] sm:$0xff]
    %v1514 = vld [vmem:[#allocation7 + $0x40] sm:$0xff]
    %v1515 = vld [vmem:[#allocation7 + $0x48] sm:$0xff]
    %v1516 = vld [vmem:[#allocation7 + $0x50] sm:$0xff]
    %v1517 = vld [vmem:[#allocation7 + $0x58] sm:$0xff]
    %v1518 = vld [vmem:[#allocation7 + $0x60] sm:$0xff]
    %v1519 = vld [vmem:[#allocation7 + $0x68] sm:$0xff]
    %v1520 = vld [vmem:[#allocation7 + $0x70] sm:$0xff]
    %v1521 = vld [vmem:[#allocation7 + $0x78] sm:$0xff]
    %v1522 = vld [vmem:[#allocation7 + $0x80] sm:$0xff]
    %v1523 = vld [vmem:[#allocation7 + $0x88] sm:$0xff]
    %v1524 = vld [vmem:[#allocation7 + $0x90] sm:$0xff]
    %v1525 = vld [vmem:[#allocation7 + $0x98] sm:$0xff]
    %v1526 = vld [vmem:[#allocation7 + $0xa0] sm:$0xff]
    %v1527 = vld [vmem:[#allocation7 + $0xa8] sm:$0xff]
    %v1528 = vld [vmem:[#allocation7 + $0xb0] sm:$0xff]
    %v1529 = vld [vmem:[#allocation7 + $0xb8] sm:$0xff]
    %v1530 = vld [vmem:[#allocation7 + $0xc0] sm:$0xff]
    %v1531 = vld [vmem:[#allocation7 + $0xc8] sm:$0xff]
    %v1532 = vld [vmem:[#allocation7 + $0xd0] sm:$0xff]
    %v1533 = vld [vmem:[#allocation7 + $0xd8] sm:$0xff]
    %v1534 = vld [vmem:[#allocation7 + $0xe0] sm:$0xff]
    %v1535 = vld [vmem:[#allocation7 + $0xe8] sm:$0xff]
    %v1536 = vld [vmem:[#allocation7 + $0xf0] sm:$0xff]
    %v1537 = vld [vmem:[#allocation7 + $0xf8] sm:$0xff]
    %v1538 = vld [vmem:[%s8] sm:$0x3]
    %v1540 = vlaneseq
    %v1541 = vshrl.u32 %v1540, 7
    %v1542 = vsub.s32 0, %v1541
    %v1543 = vrot.slane %v1538, %v1542
    %v1544 = vlaneseq
    %v1545 = vshrl.u32 %v1544, 7
    %v1546 = vsub.s32 1, %v1545
    %v1547 = vrot.slane %v1538, %v1546
    %v1582 = vunpack.c.l.b16 %v1506
    %v1583 = vunpack.c.h.b16 %v1506
    %v1584 = vunpack.c.l.b16 %v1507
    %v1585 = vunpack.c.h.b16 %v1507
    %v1586 = vunpack.c.l.b16 %v1508
    %v1587 = vunpack.c.h.b16 %v1508
    %v1588 = vunpack.c.l.b16 %v1509
    %v1589 = vunpack.c.h.b16 %v1509
    %v1590 = vunpack.c.l.b16 %v1510
    %v1591 = vunpack.c.h.b16 %v1510
    %v1592 = vunpack.c.l.b16 %v1511
    %v1593 = vunpack.c.h.b16 %v1511
    %v1594 = vunpack.c.l.b16 %v1512
    %v1595 = vunpack.c.h.b16 %v1512
    %v1596 = vunpack.c.l.b16 %v1513
    %v1597 = vunpack.c.h.b16 %v1513
    %v1598 = vunpack.c.l.b16 %v1514
    %v1599 = vunpack.c.h.b16 %v1514
    %v1600 = vunpack.c.l.b16 %v1515
    %v1601 = vunpack.c.h.b16 %v1515
    %v1602 = vunpack.c.l.b16 %v1516
    %v1603 = vunpack.c.h.b16 %v1516
    %v1604 = vunpack.c.l.b16 %v1517
    %v1605 = vunpack.c.h.b16 %v1517
    %v1606 = vunpack.c.l.b16 %v1518
    %v1607 = vunpack.c.h.b16 %v1518
    %v1608 = vunpack.c.l.b16 %v1519
    %v1609 = vunpack.c.h.b16 %v1519
    %v1610 = vunpack.c.l.b16 %v1520
    %v1611 = vunpack.c.h.b16 %v1520
    %v1612 = vunpack.c.l.b16 %v1521
    %v1613 = vunpack.c.h.b16 %v1521
    %v1614 = vunpack.c.l.b16 %v1522
    %v1615 = vunpack.c.h.b16 %v1522
    %v1616 = vunpack.c.l.b16 %v1523
    %v1617 = vunpack.c.h.b16 %v1523
    %v1618 = vunpack.c.l.b16 %v1524
    %v1619 = vunpack.c.h.b16 %v1524
    %v1620 = vunpack.c.l.b16 %v1525
    %v1621 = vunpack.c.h.b16 %v1525
    %v1622 = vunpack.c.l.b16 %v1526
    %v1623 = vunpack.c.h.b16 %v1526
    %v1624 = vunpack.c.l.b16 %v1527
    %v1625 = vunpack.c.h.b16 %v1527
    %v1626 = vunpack.c.l.b16 %v1528
    %v1627 = vunpack.c.h.b16 %v1528
    %v1628 = vunpack.c.l.b16 %v1529
    %v1629 = vunpack.c.h.b16 %v1529
    %v1630 = vunpack.c.l.b16 %v1530
    %v1631 = vunpack.c.h.b16 %v1530
    %v1632 = vunpack.c.l.b16 %v1531
    %v1633 = vunpack.c.h.b16 %v1531
    %v1634 = vunpack.c.l.b16 %v1532
    %v1635 = vunpack.c.h.b16 %v1532
    %v1636 = vunpack.c.l.b16 %v1533
    %v1637 = vunpack.c.h.b16 %v1533
    %v1638 = vunpack.c.l.b16 %v1534
    %v1639 = vunpack.c.h.b16 %v1534
    %v1640 = vunpack.c.l.b16 %v1535
    %v1641 = vunpack.c.h.b16 %v1535
    %v1642 = vunpack.c.l.b16 %v1536
    %v1643 = vunpack.c.h.b16 %v1536
    %v1644 = vunpack.c.l.b16 %v1537
    %v1645 = vunpack.c.h.b16 %v1537
    %v1646 = vpack.c.b16 %v1584, %v1582
    %v1647 = vpack.c.b16 %v1585, %v1583
    %v1648 = vpack.c.b16 %v1588, %v1586
    %v1649 = vpack.c.b16 %v1589, %v1587
    %v1650 = vpack.c.b16 %v1592, %v1590
    %v1651 = vpack.c.b16 %v1593, %v1591
    %v1652 = vpack.c.b16 %v1596, %v1594
    %v1653 = vpack.c.b16 %v1597, %v1595
    %v1654 = vpack.c.b16 %v1600, %v1598
    %v1655 = vpack.c.b16 %v1601, %v1599
    %v1656 = vpack.c.b16 %v1604, %v1602
    %v1657 = vpack.c.b16 %v1605, %v1603
    %v1658 = vpack.c.b16 %v1608, %v1606
    %v1659 = vpack.c.b16 %v1609, %v1607
    %v1660 = vpack.c.b16 %v1612, %v1610
    %v1661 = vpack.c.b16 %v1613, %v1611
    %v1662 = vpack.c.b16 %v1616, %v1614
    %v1663 = vpack.c.b16 %v1617, %v1615
    %v1664 = vpack.c.b16 %v1620, %v1618
    %v1665 = vpack.c.b16 %v1621, %v1619
    %v1666 = vpack.c.b16 %v1624, %v1622
    %v1667 = vpack.c.b16 %v1625, %v1623
    %v1668 = vpack.c.b16 %v1628, %v1626
    %v1669 = vpack.c.b16 %v1629, %v1627
    %v1670 = vpack.c.b16 %v1632, %v1630
    %v1671 = vpack.c.b16 %v1633, %v1631
    %v1672 = vpack.c.b16 %v1636, %v1634
    %v1673 = vpack.c.b16 %v1637, %v1635
    %v1674 = vpack.c.b16 %v1640, %v1638
    %v1675 = vpack.c.b16 %v1641, %v1639
    %v1676 = vpack.c.b16 %v1644, %v1642
    %v1677 = vpack.c.b16 %v1645, %v1643
    %1710 = vmatprep.subr.bf16.mxu0 %v1647
    %1711 = vmatpush1.bf16.msra.mxu0 %v1646
    %1712 = vmatprep.subr.bf16.mxu0 %v1649
    %1713 = vmatpush1.bf16.msra.mxu0 %v1648
    %1714 = vmatprep.subr.bf16.mxu0 %v1651
    %1715 = vmatpush1.bf16.msra.mxu0 %v1650
    %1716 = vmatprep.subr.bf16.mxu0 %v1653
    %1717 = vmatpush1.bf16.msra.mxu0 %v1652
    %1718 = vmatprep.subr.bf16.mxu0 %v1655
    %1719 = vmatpush1.bf16.msra.mxu0 %v1654
    %1720 = vmatprep.subr.bf16.mxu0 %v1657
    %1721 = vmatpush1.bf16.msra.mxu0 %v1656
    %1722 = vmatprep.subr.bf16.mxu0 %v1659
    %1723 = vmatpush1.bf16.msra.mxu0 %v1658
    %1724 = vmatprep.subr.bf16.mxu0 %v1661
    %1725 = vmatpush1.bf16.msra.mxu0 %v1660
    %1726 = vmatprep.subr.bf16.mxu0 %v1663
    %1727 = vmatpush1.bf16.msra.mxu0 %v1662
    %1728 = vmatprep.subr.bf16.mxu0 %v1665
    %1729 = vmatpush1.bf16.msra.mxu0 %v1664
    %1730 = vmatprep.subr.bf16.mxu0 %v1667
    %1731 = vmatpush1.bf16.msra.mxu0 %v1666
    %1732 = vmatprep.subr.bf16.mxu0 %v1669
    %1733 = vmatpush1.bf16.msra.mxu0 %v1668
    %1734 = vmatprep.subr.bf16.mxu0 %v1671
    %1735 = vmatpush1.bf16.msra.mxu0 %v1670
    %1736 = vmatprep.subr.bf16.mxu0 %v1673
    %1737 = vmatpush1.bf16.msra.mxu0 %v1672
    %1738 = vmatprep.subr.bf16.mxu0 %v1675
    %1739 = vmatpush1.bf16.msra.mxu0 %v1674
    %1740 = vmatprep.subr.bf16.mxu0 %v1677
    %1741 = vmatpush1.bf16.msra.mxu0 %v1676
    %1742 = vmatprep.mubr.bf16.mxu0 %v1505
    %1743 = vmatmul.mubr.bf16.gmra.mrb[0].mxu0 %v1504
    %v1744 = vpop.f32.mrb[0].mxu0
    %v1745 = vadd.f32 %v1543, %v1744
    %v1746 = vpop.f32.mrb[0].mxu0
    %v1747 = vadd.f32 %v1547, %v1746
    %v1748 = vpop.f32.mrb[0].mxu0
    %v1749 = vadd.f32 %v1543, %v1748
    %v1750 = vpop.f32.mrb[0].mxu0
    %v1751 = vadd.f32 %v1547, %v1750
    %1752 = vdwg.mxu0
    %v1753 = vmax.f32 %v1745, 0.0
    %v1754 = vmax.f32 %v1747, 0.0
    %v1755 = vmax.f32 %v1749, 0.0
    %v1756 = vmax.f32 %v1751, 0.0
    %v1757 = vpack.c.bf16 %v1755, %v1753
    %v1758 = vpack.c.bf16 %v1756, %v1754
    %v1759 = vld [vmem:[%s9] sm:$0xf]
    %v1760 = vld [vmem:[%s9 + $0x4] sm:$0xf]
    %v1761 = vld [vmem:[%s9 + $0x8] sm:$0xf]
    %v1762 = vld [vmem:[%s9 + $0xc] sm:$0xf]
    %v1763 = vld [vmem:[%s9 + $0x10] sm:$0xf]
    %v1764 = vld [vmem:[%s9 + $0x14] sm:$0xf]
    %v1765 = vld [vmem:[%s9 + $0x18] sm:$0xf]
    %v1766 = vld [vmem:[%s9 + $0x1c] sm:$0xf]
    %v1767 = vld [vmem:[%s9 + $0x20] sm:$0xf]
    %v1768 = vld [vmem:[%s9 + $0x24] sm:$0xf]
    %v1769 = vld [vmem:[%s9 + $0x28] sm:$0xf]
    %v1770 = vld [vmem:[%s9 + $0x2c] sm:$0xf]
    %v1771 = vld [vmem:[%s9 + $0x30] sm:$0xf]
    %v1772 = vld [vmem:[%s9 + $0x34] sm:$0xf]
    %v1773 = vld [vmem:[%s9 + $0x38] sm:$0xf]
    %v1774 = vld [vmem:[%s9 + $0x3c] sm:$0xf]
    %v1775 = vld [vmem:[%s9 + $0x40] sm:$0xf]
    %v1776 = vld [vmem:[%s9 + $0x44] sm:$0xf]
    %v1777 = vld [vmem:[%s9 + $0x48] sm:$0xf]
    %v1778 = vld [vmem:[%s9 + $0x4c] sm:$0xf]
    %v1779 = vld [vmem:[%s9 + $0x50] sm:$0xf]
    %v1780 = vld [vmem:[%s9 + $0x54] sm:$0xf]
    %v1781 = vld [vmem:[%s9 + $0x58] sm:$0xf]
    %v1782 = vld [vmem:[%s9 + $0x5c] sm:$0xf]
    %v1783 = vld [vmem:[%s9 + $0x60] sm:$0xf]
    %v1784 = vld [vmem:[%s9 + $0x64] sm:$0xf]
    %v1785 = vld [vmem:[%s9 + $0x68] sm:$0xf]
    %v1786 = vld [vmem:[%s9 + $0x6c] sm:$0xf]
    %v1787 = vld [vmem:[%s9 + $0x70] sm:$0xf]
    %v1788 = vld [vmem:[%s9 + $0x74] sm:$0xf]
    %v1789 = vld [vmem:[%s9 + $0x78] sm:$0xf]
    %v1790 = vld [vmem:[%s9 + $0x7c] sm:$0xf]
    %v1791 = vld [vmem:[%s10] sm:$0x1]
    %v1793 = vlaneseq
    %v1794 = vshrl.u32 %v1793, 7
    %v1795 = vsub.s32 0, %v1794
    %v1796 = vrot.slane %v1791, %v1795
    %v1830 = vunpack.c.l.b16 %v1759
    %v1831 = vunpack.c.l.b16 %v1760
    %v1832 = vunpack.c.l.b16 %v1761
    %v1833 = vunpack.c.l.b16 %v1762
    %v1834 = vunpack.c.l.b16 %v1763
    %v1835 = vunpack.c.l.b16 %v1764
    %v1836 = vunpack.c.l.b16 %v1765
    %v1837 = vunpack.c.l.b16 %v1766
    %v1838 = vunpack.c.l.b16 %v1767
    %v1839 = vunpack.c.l.b16 %v1768
    %v1840 = vunpack.c.l.b16 %v1769
    %v1841 = vunpack.c.l.b16 %v1770
    %v1842 = vunpack.c.l.b16 %v1771
    %v1843 = vunpack.c.l.b16 %v1772
    %v1844 = vunpack.c.l.b16 %v1773
    %v1845 = vunpack.c.l.b16 %v1774
    %v1846 = vunpack.c.l.b16 %v1775
    %v1847 = vunpack.c.l.b16 %v1776
    %v1848 = vunpack.c.l.b16 %v1777
    %v1849 = vunpack.c.l.b16 %v1778
    %v1850 = vunpack.c.l.b16 %v1779
    %v1851 = vunpack.c.l.b16 %v1780
    %v1852 = vunpack.c.l.b16 %v1781
    %v1853 = vunpack.c.l.b16 %v1782
    %v1854 = vunpack.c.l.b16 %v1783
    %v1855 = vunpack.c.l.b16 %v1784
    %v1856 = vunpack.c.l.b16 %v1785
    %v1857 = vunpack.c.l.b16 %v1786
    %v1858 = vunpack.c.l.b16 %v1787
    %v1859 = vunpack.c.l.b16 %v1788
    %v1860 = vunpack.c.l.b16 %v1789
    %v1861 = vunpack.c.l.b16 %v1790
    %v1862 = vpack.c.b16 %v1831, %v1830
    %v1863 = vpack.c.b16 %v1833, %v1832
    %v1864 = vpack.c.b16 %v1835, %v1834
    %v1865 = vpack.c.b16 %v1837, %v1836
    %v1866 = vpack.c.b16 %v1839, %v1838
    %v1867 = vpack.c.b16 %v1841, %v1840
    %v1868 = vpack.c.b16 %v1843, %v1842
    %v1869 = vpack.c.b16 %v1845, %v1844
    %v1870 = vpack.c.b16 %v1847, %v1846
    %v1871 = vpack.c.b16 %v1849, %v1848
    %v1872 = vpack.c.b16 %v1851, %v1850
    %v1873 = vpack.c.b16 %v1853, %v1852
    %v1874 = vpack.c.b16 %v1855, %v1854
    %v1875 = vpack.c.b16 %v1857, %v1856
    %v1876 = vpack.c.b16 %v1859, %v1858
    %v1877 = vpack.c.b16 %v1861, %v1860
    %1894 = vmatprep.subr.bf16.mxu0 0
    %1895 = vmatpush1.bf16.msra.mxu0 %v1862
    %1896 = vmatprep.subr.bf16.mxu0 0
    %1897 = vmatpush1.bf16.msra.mxu0 %v1863
    %1898 = vmatprep.subr.bf16.mxu0 0
    %1899 = vmatpush1.bf16.msra.mxu0 %v1864
    %1900 = vmatprep.subr.bf16.mxu0 0
    %1901 = vmatpush1.bf16.msra.mxu0 %v1865
    %1902 = vmatprep.subr.bf16.mxu0 0
    %1903 = vmatpush1.bf16.msra.mxu0 %v1866
    %1904 = vmatprep.subr.bf16.mxu0 0
    %1905 = vmatpush1.bf16.msra.mxu0 %v1867
    %1906 = vmatprep.subr.bf16.mxu0 0
    %1907 = vmatpush1.bf16.msra.mxu0 %v1868
    %1908 = vmatprep.subr.bf16.mxu0 0
    %1909 = vmatpush1.bf16.msra.mxu0 %v1869
    %1910 = vmatprep.subr.bf16.mxu0 0
    %1911 = vmatpush1.bf16.msra.mxu0 %v1870
    %1912 = vmatprep.subr.bf16.mxu0 0
    %1913 = vmatpush1.bf16.msra.mxu0 %v1871
    %1914 = vmatprep.subr.bf16.mxu0 0
    %1915 = vmatpush1.bf16.msra.mxu0 %v1872
    %1916 = vmatprep.subr.bf16.mxu0 0
    %1917 = vmatpush1.bf16.msra.mxu0 %v1873
    %1918 = vmatprep.subr.bf16.mxu0 0
    %1919 = vmatpush1.bf16.msra.mxu0 %v1874
    %1920 = vmatprep.subr.bf16.mxu0 0
    %1921 = vmatpush1.bf16.msra.mxu0 %v1875
    %1922 = vmatprep.subr.bf16.mxu0 0
    %1923 = vmatpush1.bf16.msra.mxu0 %v1876
    %1924 = vmatprep.subr.bf16.mxu0 0
    %1925 = vmatpush1.bf16.msra.mxu0 %v1877
    %1926 = vmatprep.mubr.bf16.mxu0 %v1758
    %1927 = vmatmul.mubr.bf16.gmra.mrb[0].mxu0 %v1757
    %v1928 = vpop.f32.mrb[0].mxu0
    %v1929 = vadd.f32 %v1796, %v1928
    %v1930 = vpop.f32.mrb[0].mxu0
    %v1931 = vpop.f32.mrb[0].mxu0
    %v1932 = vadd.f32 %v1796, %v1931
    %v1933 = vpop.f32.mrb[0].mxu0
    %1934 = vdwg.mxu0
    %1935 = vst [vmem:[%s11] sm:$0xff] %v1929
    %1936 = vst [vmem:[%s11 + $0x8] sm:$0xff] %v1932
    // Predicated region
    $region62: #{net_forward.1} parent=1 // pred_check
      _
    $region63: #{net_forward.1} parent=1 // pred_check_branch
      %1938 = sbr.rel (0) target = $region65
    $region64: #{net_forward.1} parent=1 // pred_region
      _
    $region65: #{net_forward.1} parent=1 // pred_fallthru
      _
    // Predicated region
    $region66: #{net_forward.1} parent=1 // pred_check
      _
    $region67: #{net_forward.1} parent=1 // pred_check_branch
      %1940 = sbr.rel (0) target = $region69
    $region68: #{net_forward.1} parent=1 // pred_region
      _
    $region69: #{net_forward.1} parent=1 // pred_fallthru
      _
    %1941 = vsyncpa [#allocation3], 1
    %1942 = vsyncpa [#allocation5], 1
    %1943 = vsyncpa [#allocation8], 1

</llo_original>
